<compile_context>
chip_gen: v7x
topology: tpu7x:2x2x1
jax: 0.10.0
libtpu: 0.0.40
codegen_flags: <defaults>
</compile_context>

<pallas_src>
import math

import jax
import jax.numpy as jnp
from jax.experimental import pallas as pl
from jax.experimental.pallas import tpu as pltpu


def _round_up(x, m):
    return ((x + m - 1) // m) * m


def attention_kernel(seq_ref, tgt_ref, wq_ref, wk_ref, bqk_ref, ws_ref, mask_ref,
                     out_ref, attn_ref):
    TB, Lp, D = seq_ref.shape
    seq = seq_ref[...]                                     # [TB, Lp, D] activation dtype
    tgt = tgt_ref[...]                                     # [TB, D]

    mm_dtype = wq_ref.dtype                                # explicit matmul precision
    # Lp is a multiple of 8, so this reshape is a zero-copy re-view.
    seq2d = seq.reshape(TB * Lp, D).astype(mm_dtype)       # [TB*Lp, D]

    # Projections on the MXU, fp32 accumulate. TB*Lp rows fill the MXU instead of
    # running per-example 8-row matmuls.
    q = jnp.dot(tgt.astype(mm_dtype), wq_ref[...],
                preferred_element_type=jnp.float32)        # [TB, D]
    k = jnp.dot(seq2d, wk_ref[...],
                preferred_element_type=jnp.float32)        # [TB*Lp, D]

    # Additive-attention pre-activation. bq + bk is one folded bias row; the scalar
    # score-layer bias is omitted (softmax is shift-invariant).
    h = jnp.tanh(q[:, None, :] + k.reshape(TB, Lp, D) + bqk_ref[...])   # [TB, Lp, D]

    # Score reduction <h, ws> also on the (otherwise idle) MXU: [TB*Lp, D] @ [D, 1].
    s = jnp.dot(h.reshape(TB * Lp, D).astype(mm_dtype), ws_ref[...],
                preferred_element_type=jnp.float32).reshape(TB, Lp)
    s = s + mask_ref[...]                                  # -1e30 on padded L positions

    # Softmax over the sequence axis (lanes).
    m = jnp.max(s, axis=-1, keepdims=True)
    e = jnp.exp(s - m)
    w = e / jnp.sum(e, axis=-1, keepdims=True)             # [TB, Lp]

    # Attention-weighted sum of the original-precision sequence embeddings.
    out = jnp.sum(seq * w[:, :, None].astype(seq.dtype), axis=1)        # [TB, D]

    out_ref[...] = out.astype(out_ref.dtype)
    attn_ref[...] = w.astype(attn_ref.dtype)


def attention_forward(sequence_embeds, target_embed, params, *, tb=128,
                      matmul_dtype=jnp.float32):
    """Additive attention.  sequence_embeds: [B, L, D], target_embed: [B, D].
    Returns (weighted_sequence [B, D], attention_weights [B, L])."""
    B, L, D = sequence_embeds.shape
    out_dtype = sequence_embeds.dtype

    # --- pad L to a sublane multiple so the in-kernel reshape stays a zero-copy view --
    Lp = _round_up(max(L, 1), 8)
    if Lp != L:
        sequence_embeds = jnp.pad(sequence_embeds, ((0, 0), (0, Lp - L), (0, 0)))
    score_mask = jnp.where(jnp.arange(Lp) < L, 0.0, -1e30).astype(jnp.float32)
    score_mask = score_mask.reshape(1, Lp)

    # --- batch tiling -----------------------------------------------------------------
    # Big default tile amortizes the ~0.35us/step pipeline overhead and gives the key
    # projection >=256 MXU rows.  Small batches run whole-batch in one grid step; for
    # larger batches keep n_blocks even so the "parallel" axis splits across both
    # TensorCores on v7x without an idle tail step.
    if tb >= B:
        tb_eff = _round_up(B, 8)
        n_blocks = 1
    else:
        tb_eff = max(8, (tb // 8) * 8)
        n_blocks = pl.cdiv(B, tb_eff)
        if n_blocks > 1 and n_blocks % 2 == 1:
            n_blocks += 1
            tb_eff = _round_up(pl.cdiv(B, n_blocks), 8)
    B_pad = n_blocks * tb_eff
    if B_pad != B:
        pad = B_pad - B
        sequence_embeds = jnp.pad(sequence_embeds, ((0, pad), (0, 0), (0, 0)))
        target_embed = jnp.pad(target_embed, ((0, pad), (0, 0)))

    # --- glue in plain JAX: explicit weight precision, fold bq + bk, drop bs ----------
    wq_t = params["wq"].T.astype(matmul_dtype)                # [D, D]
    wk_t = params["wk"].T.astype(matmul_dtype)                # [D, D]
    bqk = (params["bq"] + params["bk"]).reshape(1, D).astype(jnp.float32)
    ws_col = params["ws"].reshape(D, 1).astype(matmul_dtype)  # score weights as MXU column

    # --- VMEM budget: resident weights (constant index_map) + double-buffered tiles ---
    mm_b = jnp.dtype(matmul_dtype).itemsize
    act_b = jnp.dtype(out_dtype).itemsize
    est = (2 * D * D * mm_b + (3 * D + Lp) * 4
           + 2 * tb_eff * (Lp * D + D) * act_b                # double-buffered inputs
           + 2 * tb_eff * (D + Lp) * act_b                    # double-buffered outputs
           + 4 * tb_eff * Lp * D * 4)                         # in-kernel f32 temporaries
    vmem_limit = int(min(max(2 * est, 32 * 1024 * 1024), 64 * 1024 * 1024))

    grid_spec = pltpu.PrefetchScalarGridSpec(
        num_scalar_prefetch=0,
        grid=(n_blocks,),
        in_specs=[
            pl.BlockSpec((tb_eff, Lp, D), lambda b: (b, 0, 0)),   # sequence_embeds
            pl.BlockSpec((tb_eff, D),     lambda b: (b, 0)),      # target_embed
            pl.BlockSpec((D, D),          lambda b: (0, 0)),      # Wq^T (VMEM-resident)
            pl.BlockSpec((D, D),          lambda b: (0, 0)),      # Wk^T (VMEM-resident)
            pl.BlockSpec((1, D),          lambda b: (0, 0)),      # bq + bk
            pl.BlockSpec((D, 1),          lambda b: (0, 0)),      # ws column
            pl.BlockSpec((1, Lp),         lambda b: (0, 0)),      # L-padding score mask
        ],
        out_specs=[
            pl.BlockSpec((tb_eff, D),  lambda b: (b, 0)),         # weighted_sequence
            pl.BlockSpec((tb_eff, Lp), lambda b: (b, 0)),         # attention_weights
        ],
    )

    weighted, attn = pl.pallas_call(
        attention_kernel,
        out_shape=(
            jax.ShapeDtypeStruct((B_pad, D), out_dtype),
            jax.ShapeDtypeStruct((B_pad, Lp), out_dtype),
        ),
        grid_spec=grid_spec,
        compiler_params=pltpu.CompilerParams(
            dimension_semantics=("parallel",),
            vmem_limit_bytes=vmem_limit),
    )(sequence_embeds, target_embed, wq_t, wk_t, bqk, ws_col, score_mask)

    return weighted[:B], attn[:B, :L]


def reference_forward(sequence_embeds, target_embed, params):
    # Pure-JAX reference matching the PyTorch module (keeps bs; softmax is
    # shift-invariant so results match the kernel, which drops it).
    hp = jax.lax.Precision.HIGHEST
    q = jnp.matmul(target_embed, params["wq"].T, precision=hp) + params["bq"]       # [B, D]
    k = jnp.matmul(sequence_embeds, params["wk"].T, precision=hp) + params["bk"]    # [B, L, D]
    s = jnp.matmul(jnp.tanh(q[:, None, :] + k), params["ws"].T, precision=hp)
    s = s + params["bs"]                                                             # [B, L, 1]
    s = s[..., 0]                                                                    # [B, L]
    a = jax.nn.softmax(s, axis=-1)                                                   # [B, L]
    o = jnp.sum(sequence_embeds * a[..., None], axis=1)                              # [B, D]
    return o, a


def init_params(key, embedding_dim):
    # Deterministic init mimicking nn.Linear defaults: U(-1/sqrt(fan_in), 1/sqrt(fan_in)).
    bound = 1.0 / math.sqrt(embedding_dim)
    ks = jax.random.split(key, 6)
    u = lambda k, shape: jax.random.uniform(k, shape, jnp.float32, -bound, bound)
    return {
        "wq": u(ks[0], (embedding_dim, embedding_dim)),
        "bq": u(ks[1], (embedding_dim,)),
        "wk": u(ks[2], (embedding_dim, embedding_dim)),
        "bk": u(ks[3], (embedding_dim,)),
        "ws": u(ks[4], (1, embedding_dim)),
        "bs": u(ks[5], (1,)),
    }


if __name__ == "__main__":
    embedding_dim = 128
    B, L, D = 32, 8, embedding_dim   # whole-batch grid=(1,), 256 MXU rows for the k matmul

    key = jax.random.PRNGKey(0)
    k_seq, k_tgt, k_params = jax.random.split(key, 3)

    sequence_embeds = jax.random.normal(k_seq, (B, L, D), jnp.float32)
    target_embed = jax.random.normal(k_tgt, (B, D), jnp.float32)
    params = init_params(k_params, D)

    weighted, attn = attention_forward(sequence_embeds, target_embed, params)
    weighted = jax.block_until_ready(weighted)
    attn = jax.block_until_ready(attn)

    ref_weighted, ref_attn = reference_forward(sequence_embeds, target_embed, params)

    assert weighted.shape == (B, D) and attn.shape == (B, L)
    assert jnp.allclose(weighted, ref_weighted, rtol=1e-4, atol=1e-5)
    assert jnp.allclose(attn, ref_attn, rtol=1e-4, atol=1e-5)
    assert jnp.allclose(jnp.sum(attn, axis=-1), jnp.ones((B,)), rtol=1e-5, atol=1e-5)

    print("KERNEL_OK")
</pallas_src>

<mosaic_0001>
module attributes {stable_mosaic.version = 11 : i64} {
  func.func @attention_kernel(%arg0: i32, %arg1: memref<32x8x128xf32, #tpu.memory_space<vmem>>, %arg2: memref<32x128xf32, #tpu.memory_space<vmem>>, %arg3: memref<128x128xf32, #tpu.memory_space<vmem>>, %arg4: memref<128x128xf32, #tpu.memory_space<vmem>>, %arg5: memref<1x128xf32, #tpu.memory_space<vmem>>, %arg6: memref<128x1xf32, #tpu.memory_space<vmem>>, %arg7: memref<1x8xf32, #tpu.memory_space<vmem>>, %arg8: memref<32x128xf32, #tpu.memory_space<vmem>>, %arg9: memref<32x8xf32, #tpu.memory_space<vmem>>) attributes {dimension_semantics = [#tpu.dimension_semantics<parallel>], iteration_bounds = array<i64: 1>, scalar_prefetch = 0 : i64, scratch_operands = 0 : i64, tpu.core_type = #tpu.core_type<tc>, window_params = [{transform_indices = @transform_0, window_bounds = array<i64: 32, 8, 128>}, {transform_indices = @transform_1, window_bounds = array<i64: 32, 128>}, {pipeline_mode = #tpu.pipeline_mode<synchronous>, transform_indices = @transform_2, window_bounds = array<i64: 128, 128>}, {pipeline_mode = #tpu.pipeline_mode<synchronous>, transform_indices = @transform_3, window_bounds = array<i64: 128, 128>}, {pipeline_mode = #tpu.pipeline_mode<synchronous>, transform_indices = @transform_4, window_bounds = array<i64: 1, 128>}, {pipeline_mode = #tpu.pipeline_mode<synchronous>, transform_indices = @transform_5, window_bounds = array<i64: 128, 1>}, {pipeline_mode = #tpu.pipeline_mode<synchronous>, transform_indices = @transform_6, window_bounds = array<i64: 1, 8>}, {transform_indices = @transform_7, window_bounds = array<i64: 32, 128>}, {transform_indices = @transform_8, window_bounds = array<i64: 32, 8>}]} {
    %c0 = arith.constant 0 : index
    %c0_0 = arith.constant 0 : index
    %c0_1 = arith.constant 0 : index
    %0 = vector.load %arg1[%c0, %c0_0, %c0_1] : memref<32x8x128xf32, #tpu.memory_space<vmem>>, vector<32x8x128xf32>
    %c0_2 = arith.constant 0 : index
    %c0_3 = arith.constant 0 : index
    %1 = vector.load %arg2[%c0_2, %c0_3] : memref<32x128xf32, #tpu.memory_space<vmem>>, vector<32x128xf32>
    %2 = vector.shape_cast %0 : vector<32x8x128xf32> to vector<256x128xf32>
    %c0_4 = arith.constant 0 : index
    %c0_5 = arith.constant 0 : index
    %3 = vector.load %arg3[%c0_4, %c0_5] : memref<128x128xf32, #tpu.memory_space<vmem>>, vector<128x128xf32>
    %cst = arith.constant dense<0.000000e+00> : vector<32x128xf32>
    %4 = tpu.matmul %1, %3, %cst {dimension_numbers = #tpu.dot_dimension_numbers<[1], [0], [0], [1], [0, 0, 1, 1], [], []>} : vector<32x128xf32>, vector<128x128xf32>, vector<32x128xf32> -> vector<32x128xf32>
    %c0_6 = arith.constant 0 : index
    %c0_7 = arith.constant 0 : index
    %5 = vector.load %arg4[%c0_6, %c0_7] : memref<128x128xf32, #tpu.memory_space<vmem>>, vector<128x128xf32>
    %cst_8 = arith.constant dense<0.000000e+00> : vector<256x128xf32>
    %6 = tpu.matmul %2, %5, %cst_8 {dimension_numbers = #tpu.dot_dimension_numbers<[1], [0], [0], [1], [0, 0, 1, 1], [], []>} : vector<256x128xf32>, vector<128x128xf32>, vector<256x128xf32> -> vector<256x128xf32>
    %7 = vector.shape_cast %4 : vector<32x128xf32> to vector<32x1x128xf32>
    %8 = vector.shape_cast %6 : vector<256x128xf32> to vector<32x8x128xf32>
    %9 = vector.broadcast %7 : vector<32x1x128xf32> to vector<32x8x128xf32>
    %10 = arith.addf %9, %8 : vector<32x8x128xf32>
    %c0_9 = arith.constant 0 : index
    %c0_10 = arith.constant 0 : index
    %11 = vector.load %arg5[%c0_9, %c0_10] : memref<1x128xf32, #tpu.memory_space<vmem>>, vector<1x128xf32>
    %12 = vector.shape_cast %11 : vector<1x128xf32> to vector<1x1x128xf32>
    %13 = vector.broadcast %12 : vector<1x1x128xf32> to vector<32x8x128xf32>
    %14 = arith.addf %10, %13 : vector<32x8x128xf32>
    %15 = math.tanh %14 : vector<32x8x128xf32>
    %16 = vector.shape_cast %15 : vector<32x8x128xf32> to vector<256x128xf32>
    %c0_11 = arith.constant 0 : index
    %c0_12 = arith.constant 0 : index
    %17 = vector.load %arg6[%c0_11, %c0_12] : memref<128x1xf32, #tpu.memory_space<vmem>>, vector<128x1xf32>
    %cst_13 = arith.constant dense<0.000000e+00> : vector<256x1xf32>
    %18 = tpu.matmul %16, %17, %cst_13 {dimension_numbers = #tpu.dot_dimension_numbers<[1], [0], [0], [1], [0, 0, 1, 1], [], []>} : vector<256x128xf32>, vector<128x1xf32>, vector<256x1xf32> -> vector<256x1xf32>
    %19 = vector.shape_cast %18 : vector<256x1xf32> to vector<32x8xf32>
    %c0_14 = arith.constant 0 : index
    %c0_15 = arith.constant 0 : index
    %20 = vector.load %arg7[%c0_14, %c0_15] : memref<1x8xf32, #tpu.memory_space<vmem>>, vector<1x8xf32>
    %21 = vector.broadcast %20 : vector<1x8xf32> to vector<32x8xf32>
    %22 = arith.addf %19, %21 : vector<32x8xf32>
    %cst_16 = arith.constant dense<0xFF800000> : vector<32xf32>
    %23 = vector.multi_reduction <maximumf>, %22, %cst_16 [1] : vector<32x8xf32> to vector<32xf32>
    %24 = vector.shape_cast %23 : vector<32xf32> to vector<32x1xf32>
    %25 = vector.broadcast %24 : vector<32x1xf32> to vector<32x8xf32>
    %26 = arith.subf %22, %25 : vector<32x8xf32>
    %27 = math.exp %26 : vector<32x8xf32>
    %cst_17 = arith.constant dense<0.000000e+00> : vector<32xf32>
    %28 = vector.multi_reduction <add>, %27, %cst_17 [1] : vector<32x8xf32> to vector<32xf32>
    %29 = vector.shape_cast %28 : vector<32xf32> to vector<32x1xf32>
    %30 = vector.broadcast %29 : vector<32x1xf32> to vector<32x8xf32>
    %31 = arith.divf %27, %30 : vector<32x8xf32>
    %32 = vector.shape_cast %31 : vector<32x8xf32> to vector<32x8x1xf32>
    %33 = vector.broadcast %32 : vector<32x8x1xf32> to vector<32x8x128xf32>
    %34 = arith.mulf %0, %33 : vector<32x8x128xf32>
    %cst_18 = arith.constant dense<0.000000e+00> : vector<32x128xf32>
    %35 = vector.multi_reduction <add>, %34, %cst_18 [1] : vector<32x8x128xf32> to vector<32x128xf32>
    %c0_19 = arith.constant 0 : index
    %c0_20 = arith.constant 0 : index
    %36 = vector.load %arg8[%c0_19, %c0_20] : memref<32x128xf32, #tpu.memory_space<vmem>>, vector<32x128xf32>
    tpu.vector_store %arg8[%c0_19, %c0_20], %35 {strides = array<i32>} : memref<32x128xf32, #tpu.memory_space<vmem>>, vector<32x128xf32>,
    %c0_21 = arith.constant 0 : index
    %c0_22 = arith.constant 0 : index
    %37 = vector.load %arg9[%c0_21, %c0_22] : memref<32x8xf32, #tpu.memory_space<vmem>>, vector<32x8xf32>
    tpu.vector_store %arg9[%c0_21, %c0_22], %31 {strides = array<i32>} : memref<32x8xf32, #tpu.memory_space<vmem>>, vector<32x8xf32>,
    return
  }
  func.func @transform_0(%arg0: i32) -> (i32, i32, i32) {
    %c0_i32 = arith.constant 0 : i32
    %c0_i32_0 = arith.constant 0 : i32
    %c0_i32_1 = arith.constant 0 : i32
    return %arg0, %c0_i32, %c0_i32_0 : i32, i32, i32
  }
  func.func @transform_1(%arg0: i32) -> (i32, i32) {
    %c0_i32 = arith.constant 0 : i32
    %c0_i32_0 = arith.constant 0 : i32
    return %arg0, %c0_i32 : i32, i32
  }
  func.func @transform_2(%arg0: i32) -> (i32, i32) {
    %c0_i32 = arith.constant 0 : i32
    %c0_i32_0 = arith.constant 0 : i32
    %c0_i32_1 = arith.constant 0 : i32
    return %c0_i32, %c0_i32_0 : i32, i32
  }
  func.func @transform_3(%arg0: i32) -> (i32, i32) {
    %c0_i32 = arith.constant 0 : i32
    %c0_i32_0 = arith.constant 0 : i32
    %c0_i32_1 = arith.constant 0 : i32
    return %c0_i32, %c0_i32_0 : i32, i32
  }
  func.func @transform_4(%arg0: i32) -> (i32, i32) {
    %c0_i32 = arith.constant 0 : i32
    %c0_i32_0 = arith.constant 0 : i32
    %c0_i32_1 = arith.constant 0 : i32
    return %c0_i32, %c0_i32_0 : i32, i32
  }
  func.func @transform_5(%arg0: i32) -> (i32, i32) {
    %c0_i32 = arith.constant 0 : i32
    %c0_i32_0 = arith.constant 0 : i32
    %c0_i32_1 = arith.constant 0 : i32
    return %c0_i32, %c0_i32_0 : i32, i32
  }
  func.func @transform_6(%arg0: i32) -> (i32, i32) {
    %c0_i32 = arith.constant 0 : i32
    %c0_i32_0 = arith.constant 0 : i32
    %c0_i32_1 = arith.constant 0 : i32
    return %c0_i32, %c0_i32_0 : i32, i32
  }
  func.func @transform_7(%arg0: i32) -> (i32, i32) {
    %c0_i32 = arith.constant 0 : i32
    %c0_i32_0 = arith.constant 0 : i32
    return %arg0, %c0_i32 : i32, i32
  }
  func.func @transform_8(%arg0: i32) -> (i32, i32) {
    %c0_i32 = arith.constant 0 : i32
    %c0_i32_0 = arith.constant 0 : i32
    return %arg0, %c0_i32 : i32, i32
  }
}

</mosaic_0001>

<llo_original>
// kernel: tpu_custom_call.1
$region0: #{tpu_custom_call.1}
  #allocation0 [shape = 'u32[]', space=smem, size = 0x4, offset = 0x4, fixed_abs, tag = 'smem constant byte address 0x4 - core index']
  #allocation1 [shape = 'u32[144,128]{1,0:T(1,128)}', space=vmem, size = 0x12000, scoped, tag = 'internal scratch']
  %s0 = inlined_call_operand.hbm [shape: f32[32,8,128], index: 0, kind: input, shape index: {}]
  %s1 = inlined_call_operand.hbm [shape: f32[32,128], index: 1, kind: input, shape index: {}]
  %s2 = inlined_call_operand.vmem [shape: f32[128,128], index: 2, kind: input, shape index: {}]
  %s3 = inlined_call_operand.hbm [shape: f32[128,128], index: 3, kind: input, shape index: {}]
  %s4 = inlined_call_operand.vmem [shape: f32[1,128], index: 4, kind: input, shape index: {}]
  %s5 = inlined_call_operand.vmem [shape: f32[128,1], index: 5, kind: input, shape index: {}]
  %s6 = inlined_call_operand.vmem [shape: f32[1,8], index: 6, kind: input, shape index: {}]
  %s7 = inlined_call_operand.hbm [shape: f32[32,128], index: 7, kind: output, shape index: {0}]
  %s8 = inlined_call_operand.vmem [shape: f32[32,8], index: 8, kind: output, shape index: {1}]
  %9 = xla_tuple %s7, %s8
  %s10 = sld [smem:[#allocation0]]
  $region58: #{tpu_custom_call.1} parent=0
    _
  %s12 = ssub.s32 1, %s10
  %s13 = scalar_select 0, %s12, %s10
  $region1: #{tpu_custom_call.1} parent=0
    #allocation2 [shape = 'u8[131072]{0}', space=vmem, size = 0x20000, scoped, tag = 'input window, operand 0, single buffered']
    #allocation3 [shape = 's32[1]{0}', space=sflag, size = 0x4, scoped, tag = 'scoped memory for tpu_custom_call.1']
    #allocation4 [shape = 's32[1]{0}', space=sflag, size = 0x4, scoped, tag = 'scoped memory for tpu_custom_call.1']
    #allocation5 [shape = 'u8[16384]{0}', space=vmem, size = 0x4000, scoped, tag = 'input window, operand 1, single buffered']
    #allocation6 [shape = 's32[1]{0}', space=sflag, size = 0x4, scoped, tag = 'scoped memory for tpu_custom_call.1']
    #allocation7 [shape = 'u8[65536]{0}', space=vmem, size = 0x10000, scoped, tag = 'input window, operand 3, single buffered']
    #allocation8 [shape = 'u8[16384]{0}', space=vmem, size = 0x4000, scoped, tag = 'output window, operand 0, single buffered']
    %14 = vsyncpa [#allocation3], 0
    %15 = vsyncpa [#allocation6], 0
    %16 = vsyncpa [#allocation4], 0
    // Predicated region
    $region2: #{tpu_custom_call.1} parent=1 // pred_check
      _
    $region3: #{tpu_custom_call.1} parent=1 // pred_check_branch
      %18 = sbr.rel (0) target = $region5
    $region4: #{tpu_custom_call.1} parent=1 // pred_region
      %s20 = ssub.s32 4096, 4096
      %21 = vsyncadd [#allocation3], %s20
      %s22 = sshll.u32 [#allocation2], 4
      %s23 = int_to_ptr.vmem [resolvable:$true] %s22
      %28 = dma.hbm_to_vmem [thread:$0]  %s0, 4096, %s23, [#allocation3], 128, 128, 8
    $region5: #{tpu_custom_call.1} parent=1 // pred_fallthru
      _
    // Predicated region
    $region6: #{tpu_custom_call.1} parent=1 // pred_check
      _
    $region7: #{tpu_custom_call.1} parent=1 // pred_check_branch
      %30 = sbr.rel (0) target = $region9
    $region8: #{tpu_custom_call.1} parent=1 // pred_region
      %s32 = ssub.s32 512, 512
      %33 = vsyncadd [#allocation6], %s32
      %s34 = sshll.u32 [#allocation5], 4
      %s35 = int_to_ptr.vmem [resolvable:$true] %s34
      %40 = dma.hbm_to_vmem [thread:$0]  %s1, 512, %s35, [#allocation6], 128, 128, 8
    $region9: #{tpu_custom_call.1} parent=1 // pred_fallthru
      _
    // Predicated region
    $region10: #{tpu_custom_call.1} parent=1 // pred_check
      _
    $region11: #{tpu_custom_call.1} parent=1 // pred_check_branch
      %42 = sbr.rel (0) target = $region13
    $region12: #{tpu_custom_call.1} parent=1 // pred_region
      _
    $region13: #{tpu_custom_call.1} parent=1 // pred_fallthru
      _
    // Predicated region
    $region14: #{tpu_custom_call.1} parent=1 // pred_check
      _
    $region15: #{tpu_custom_call.1} parent=1 // pred_check_branch
      %44 = sbr.rel (0) target = $region17
    $region16: #{tpu_custom_call.1} parent=1 // pred_region
      %s46 = ssub.s32 2048, 2048
      %47 = vsyncadd [#allocation6], %s46
      %s48 = sshll.u32 [#allocation7], 4
      %s49 = int_to_ptr.vmem [resolvable:$true] %s48
      %54 = dma.hbm_to_vmem [thread:$0]  %s3, 2048, %s49, [#allocation6], 128, 128, 8
    $region17: #{tpu_custom_call.1} parent=1 // pred_fallthru
      _
    // Predicated region
    $region18: #{tpu_custom_call.1} parent=1 // pred_check
      _
    $region19: #{tpu_custom_call.1} parent=1 // pred_check_branch
      %56 = sbr.rel (0) target = $region21
    $region20: #{tpu_custom_call.1} parent=1 // pred_region
      _
    $region21: #{tpu_custom_call.1} parent=1 // pred_fallthru
      _
    // Predicated region
    $region22: #{tpu_custom_call.1} parent=1 // pred_check
      _
    $region23: #{tpu_custom_call.1} parent=1 // pred_check_branch
      %58 = sbr.rel (0) target = $region25
    $region24: #{tpu_custom_call.1} parent=1 // pred_region
      _
    $region25: #{tpu_custom_call.1} parent=1 // pred_fallthru
      _
    // Predicated region
    $region26: #{tpu_custom_call.1} parent=1 // pred_check
      _
    $region27: #{tpu_custom_call.1} parent=1 // pred_check_branch
      %60 = sbr.rel (0) target = $region29
    $region28: #{tpu_custom_call.1} parent=1 // pred_region
      _
    $region29: #{tpu_custom_call.1} parent=1 // pred_fallthru
      _
    // Predicated region
    $region30: #{tpu_custom_call.1} parent=1 // pred_check
      _
    $region31: #{tpu_custom_call.1} parent=1 // pred_check_branch
      %62 = sbr.rel (0) target = $region33
    $region32: #{tpu_custom_call.1} parent=1 // pred_region
      %63 = dma.done [#allocation3], 4096
    $region33: #{tpu_custom_call.1} parent=1 // pred_fallthru
      _
    // Predicated region
    $region34: #{tpu_custom_call.1} parent=1 // pred_check
      _
    $region35: #{tpu_custom_call.1} parent=1 // pred_check_branch
      %65 = sbr.rel (0) target = $region37
    $region36: #{tpu_custom_call.1} parent=1 // pred_region
      %66 = dma.done [#allocation6], 512
    $region37: #{tpu_custom_call.1} parent=1 // pred_fallthru
      _
    // Predicated region
    $region38: #{tpu_custom_call.1} parent=1 // pred_check
      _
    $region39: #{tpu_custom_call.1} parent=1 // pred_check_branch
      %68 = sbr.rel (0) target = $region41
    $region40: #{tpu_custom_call.1} parent=1 // pred_region
      %69 = dma.done [#allocation6], 2048
    $region41: #{tpu_custom_call.1} parent=1 // pred_fallthru
      _
    %v70 = vld [vmem:[#allocation2] sm:$0xff]
    %v71 = vld [vmem:[#allocation2 + $0x8] sm:$0xff]
    %v72 = vld [vmem:[#allocation2 + $0x10] sm:$0xff]
    %v73 = vld [vmem:[#allocation2 + $0x18] sm:$0xff]
    %v74 = vld [vmem:[#allocation2 + $0x20] sm:$0xff]
    %v75 = vld [vmem:[#allocation2 + $0x28] sm:$0xff]
    %v76 = vld [vmem:[#allocation2 + $0x30] sm:$0xff]
    %v77 = vld [vmem:[#allocation2 + $0x38] sm:$0xff]
    %v78 = vld [vmem:[#allocation2 + $0x40] sm:$0xff]
    %v79 = vld [vmem:[#allocation2 + $0x48] sm:$0xff]
    %v80 = vld [vmem:[#allocation2 + $0x50] sm:$0xff]
    %v81 = vld [vmem:[#allocation2 + $0x58] sm:$0xff]
    %v82 = vld [vmem:[#allocation2 + $0x60] sm:$0xff]
    %v83 = vld [vmem:[#allocation2 + $0x68] sm:$0xff]
    %v84 = vld [vmem:[#allocation2 + $0x70] sm:$0xff]
    %v85 = vld [vmem:[#allocation2 + $0x78] sm:$0xff]
    %v86 = vld [vmem:[#allocation2 + $0x80] sm:$0xff]
    %v87 = vld [vmem:[#allocation2 + $0x88] sm:$0xff]
    %v88 = vld [vmem:[#allocation2 + $0x90] sm:$0xff]
    %v89 = vld [vmem:[#allocation2 + $0x98] sm:$0xff]
    %v90 = vld [vmem:[#allocation2 + $0xa0] sm:$0xff]
    %v91 = vld [vmem:[#allocation2 + $0xa8] sm:$0xff]
    %v92 = vld [vmem:[#allocation2 + $0xb0] sm:$0xff]
    %v93 = vld [vmem:[#allocation2 + $0xb8] sm:$0xff]
    %v94 = vld [vmem:[#allocation2 + $0xc0] sm:$0xff]
    %v95 = vld [vmem:[#allocation2 + $0xc8] sm:$0xff]
    %v96 = vld [vmem:[#allocation2 + $0xd0] sm:$0xff]
    %v97 = vld [vmem:[#allocation2 + $0xd8] sm:$0xff]
    %v98 = vld [vmem:[#allocation2 + $0xe0] sm:$0xff]
    %v99 = vld [vmem:[#allocation2 + $0xe8] sm:$0xff]
    %v100 = vld [vmem:[#allocation2 + $0xf0] sm:$0xff]
    %v101 = vld [vmem:[#allocation2 + $0xf8] sm:$0xff]
    %v102 = vld [vmem:[#allocation5] sm:$0xff]
    %v103 = vld [vmem:[#allocation5 + $0x8] sm:$0xff]
    %v104 = vld [vmem:[#allocation5 + $0x10] sm:$0xff]
    %v105 = vld [vmem:[#allocation5 + $0x18] sm:$0xff]
    %v106 = vld [vmem:[%s2] sm:$0xff]
    %v107 = vld [vmem:[%s2 + $0x8] sm:$0xff]
    %v108 = vld [vmem:[%s2 + $0x10] sm:$0xff]
    %v109 = vld [vmem:[%s2 + $0x18] sm:$0xff]
    %v110 = vld [vmem:[%s2 + $0x20] sm:$0xff]
    %v111 = vld [vmem:[%s2 + $0x28] sm:$0xff]
    %v112 = vld [vmem:[%s2 + $0x30] sm:$0xff]
    %v113 = vld [vmem:[%s2 + $0x38] sm:$0xff]
    %v114 = vld [vmem:[%s2 + $0x40] sm:$0xff]
    %v115 = vld [vmem:[%s2 + $0x48] sm:$0xff]
    %v116 = vld [vmem:[%s2 + $0x50] sm:$0xff]
    %v117 = vld [vmem:[%s2 + $0x58] sm:$0xff]
    %v118 = vld [vmem:[%s2 + $0x60] sm:$0xff]
    %v119 = vld [vmem:[%s2 + $0x68] sm:$0xff]
    %v120 = vld [vmem:[%s2 + $0x70] sm:$0xff]
    %v121 = vld [vmem:[%s2 + $0x78] sm:$0xff]
    %122 = vmatprep.subr.mxu0 0.0
    %123 = vmatpush1.msra.mxu0 %v106
    %124 = vmatprep.subr.mxu0 0.0
    %125 = vmatpush1.msra.mxu0 %v107
    %126 = vmatprep.subr.mxu0 0.0
    %127 = vmatpush1.msra.mxu0 %v108
    %128 = vmatprep.subr.mxu0 0.0
    %129 = vmatpush1.msra.mxu0 %v109
    %130 = vmatprep.subr.mxu0 0.0
    %131 = vmatpush1.msra.mxu0 %v110
    %132 = vmatprep.subr.mxu0 0.0
    %133 = vmatpush1.msra.mxu0 %v111
    %134 = vmatprep.subr.mxu0 0.0
    %135 = vmatpush1.msra.mxu0 %v112
    %136 = vmatprep.subr.mxu0 0.0
    %137 = vmatpush1.msra.mxu0 %v113
    %138 = vmatprep.subr.mxu0 0.0
    %139 = vmatpush1.msra.mxu0 %v114
    %140 = vmatprep.subr.mxu0 0.0
    %141 = vmatpush1.msra.mxu0 %v115
    %142 = vmatprep.subr.mxu0 0.0
    %143 = vmatpush1.msra.mxu0 %v116
    %144 = vmatprep.subr.mxu0 0.0
    %145 = vmatpush1.msra.mxu0 %v117
    %146 = vmatprep.subr.mxu0 0.0
    %147 = vmatpush1.msra.mxu0 %v118
    %148 = vmatprep.subr.mxu0 0.0
    %149 = vmatpush1.msra.mxu0 %v119
    %150 = vmatprep.subr.mxu0 0.0
    %151 = vmatpush1.msra.mxu0 %v120
    %152 = vmatprep.subr.mxu0 0.0
    %153 = vmatpush1.msra.mxu0 %v121
    %154 = vmatprep.subr.mxu0 0.0
    %155 = vmatpush1.msra.mxu0 0.0
    %156 = vmatprep.subr.mxu0 0.0
    %157 = vmatpush1.msra.mxu0 0.0
    %158 = vmatprep.subr.mxu0 0.0
    %159 = vmatpush1.msra.mxu0 0.0
    %160 = vmatprep.subr.mxu0 0.0
    %161 = vmatpush1.msra.mxu0 0.0
    %162 = vmatprep.subr.mxu0 0.0
    %163 = vmatpush1.msra.mxu0 0.0
    %164 = vmatprep.subr.mxu0 0.0
    %165 = vmatpush1.msra.mxu0 0.0
    %166 = vmatprep.subr.mxu0 0.0
    %167 = vmatpush1.msra.mxu0 0.0
    %168 = vmatprep.subr.mxu0 0.0
    %169 = vmatpush1.msra.mxu0 0.0
    %170 = vmatprep.subr.mxu0 0.0
    %171 = vmatpush1.msra.mxu0 0.0
    %172 = vmatprep.subr.mxu0 0.0
    %173 = vmatpush1.msra.mxu0 0.0
    %174 = vmatprep.subr.mxu0 0.0
    %175 = vmatpush1.msra.mxu0 0.0
    %176 = vmatprep.subr.mxu0 0.0
    %177 = vmatpush1.msra.mxu0 0.0
    %178 = vmatprep.subr.mxu0 0.0
    %179 = vmatpush1.msra.mxu0 0.0
    %180 = vmatprep.subr.mxu0 0.0
    %181 = vmatpush1.msra.mxu0 0.0
    %182 = vmatprep.subr.mxu0 0.0
    %183 = vmatpush1.msra.mxu0 0.0
    %184 = vmatprep.subr.mxu0 0.0
    %185 = vmatpush1.msra.mxu0 0.0
    %186 = vmatprep.mubr.f32.mxu0 0.0
    %187 = vmatmul.mubr.f32.gmra.mrb[0].mxu0 %v102
    %v188 = vpop.f32.mrb[0].mxu0
    %v189 = vadd.f32 0.0, %v188
    %v190 = vpop.f32.mrb[0].mxu0
    %191 = vmatprep.mubr.f32.mxu0 0.0
    %192 = vmatmul.mubr.f32.gmra.mrb[0].mxu0 %v103
    %v193 = vpop.f32.mrb[0].mxu0
    %v194 = vadd.f32 0.0, %v193
    %v195 = vpop.f32.mrb[0].mxu0
    %196 = vmatprep.mubr.f32.mxu0 0.0
    %197 = vmatmul.mubr.f32.gmra.mrb[0].mxu0 %v104
    %v198 = vpop.f32.mrb[0].mxu0
    %v199 = vadd.f32 0.0, %v198
    %v200 = vpop.f32.mrb[0].mxu0
    %201 = vmatprep.mubr.f32.mxu0 0.0
    %202 = vmatmul.mubr.f32.gmra.mrb[0].mxu0 %v105
    %v203 = vpop.f32.mrb[0].mxu0
    %v204 = vadd.f32 0.0, %v203
    %v205 = vpop.f32.mrb[0].mxu0
    %206 = vdwg.mxu0
    %v207 = vld [vmem:[#allocation7] sm:$0xff]
    %v208 = vld [vmem:[#allocation7 + $0x8] sm:$0xff]
    %v209 = vld [vmem:[#allocation7 + $0x10] sm:$0xff]
    %v210 = vld [vmem:[#allocation7 + $0x18] sm:$0xff]
    %v211 = vld [vmem:[#allocation7 + $0x20] sm:$0xff]
    %v212 = vld [vmem:[#allocation7 + $0x28] sm:$0xff]
    %v213 = vld [vmem:[#allocation7 + $0x30] sm:$0xff]
    %v214 = vld [vmem:[#allocation7 + $0x38] sm:$0xff]
    %v215 = vld [vmem:[#allocation7 + $0x40] sm:$0xff]
    %v216 = vld [vmem:[#allocation7 + $0x48] sm:$0xff]
    %v217 = vld [vmem:[#allocation7 + $0x50] sm:$0xff]
    %v218 = vld [vmem:[#allocation7 + $0x58] sm:$0xff]
    %v219 = vld [vmem:[#allocation7 + $0x60] sm:$0xff]
    %v220 = vld [vmem:[#allocation7 + $0x68] sm:$0xff]
    %v221 = vld [vmem:[#allocation7 + $0x70] sm:$0xff]
    %v222 = vld [vmem:[#allocation7 + $0x78] sm:$0xff]
    %223 = vmatprep.subr.mxu0 0.0
    %224 = vmatpush1.msra.mxu0 %v207
    %225 = vmatprep.subr.mxu0 0.0
    %226 = vmatpush1.msra.mxu0 %v208
    %227 = vmatprep.subr.mxu0 0.0
    %228 = vmatpush1.msra.mxu0 %v209
    %229 = vmatprep.subr.mxu0 0.0
    %230 = vmatpush1.msra.mxu0 %v210
    %231 = vmatprep.subr.mxu0 0.0
    %232 = vmatpush1.msra.mxu0 %v211
    %233 = vmatprep.subr.mxu0 0.0
    %234 = vmatpush1.msra.mxu0 %v212
    %235 = vmatprep.subr.mxu0 0.0
    %236 = vmatpush1.msra.mxu0 %v213
    %237 = vmatprep.subr.mxu0 0.0
    %238 = vmatpush1.msra.mxu0 %v214
    %239 = vmatprep.subr.mxu0 0.0
    %240 = vmatpush1.msra.mxu0 %v215
    %241 = vmatprep.subr.mxu0 0.0
    %242 = vmatpush1.msra.mxu0 %v216
    %243 = vmatprep.subr.mxu0 0.0
    %244 = vmatpush1.msra.mxu0 %v217
    %245 = vmatprep.subr.mxu0 0.0
    %246 = vmatpush1.msra.mxu0 %v218
    %247 = vmatprep.subr.mxu0 0.0
    %248 = vmatpush1.msra.mxu0 %v219
    %249 = vmatprep.subr.mxu0 0.0
    %250 = vmatpush1.msra.mxu0 %v220
    %251 = vmatprep.subr.mxu0 0.0
    %252 = vmatpush1.msra.mxu0 %v221
    %253 = vmatprep.subr.mxu0 0.0
    %254 = vmatpush1.msra.mxu0 %v222
    %255 = vmatprep.subr.mxu0 0.0
    %256 = vmatpush1.msra.mxu0 0.0
    %257 = vmatprep.subr.mxu0 0.0
    %258 = vmatpush1.msra.mxu0 0.0
    %259 = vmatprep.subr.mxu0 0.0
    %260 = vmatpush1.msra.mxu0 0.0
    %261 = vmatprep.subr.mxu0 0.0
    %262 = vmatpush1.msra.mxu0 0.0
    %263 = vmatprep.subr.mxu0 0.0
    %264 = vmatpush1.msra.mxu0 0.0
    %265 = vmatprep.subr.mxu0 0.0
    %266 = vmatpush1.msra.mxu0 0.0
    %267 = vmatprep.subr.mxu0 0.0
    %268 = vmatpush1.msra.mxu0 0.0
    %269 = vmatprep.subr.mxu0 0.0
    %270 = vmatpush1.msra.mxu0 0.0
    %271 = vmatprep.subr.mxu0 0.0
    %272 = vmatpush1.msra.mxu0 0.0
    %273 = vmatprep.subr.mxu0 0.0
    %274 = vmatpush1.msra.mxu0 0.0
    %275 = vmatprep.subr.mxu0 0.0
    %276 = vmatpush1.msra.mxu0 0.0
    %277 = vmatprep.subr.mxu0 0.0
    %278 = vmatpush1.msra.mxu0 0.0
    %279 = vmatprep.subr.mxu0 0.0
    %280 = vmatpush1.msra.mxu0 0.0
    %281 = vmatprep.subr.mxu0 0.0
    %282 = vmatpush1.msra.mxu0 0.0
    %283 = vmatprep.subr.mxu0 0.0
    %284 = vmatpush1.msra.mxu0 0.0
    %285 = vmatprep.subr.mxu0 0.0
    %286 = vmatpush1.msra.mxu0 0.0
    %287 = vmatprep.mubr.f32.mxu0 0.0
    %288 = vmatmul.mubr.f32.gmra.mrb[0].mxu0 %v70
    %v289 = vpop.f32.mrb[0].mxu0
    %v290 = vadd.f32 0.0, %v289
    %v291 = vpop.f32.mrb[0].mxu0
    %292 = vmatprep.mubr.f32.mxu0 0.0
    %293 = vmatmul.mubr.f32.gmra.mrb[0].mxu0 %v71
    %v294 = vpop.f32.mrb[0].mxu0
    %v295 = vadd.f32 0.0, %v294
    %v296 = vpop.f32.mrb[0].mxu0
    %297 = vmatprep.mubr.f32.mxu0 0.0
    %298 = vmatmul.mubr.f32.gmra.mrb[0].mxu0 %v72
    %v299 = vpop.f32.mrb[0].mxu0
    %v300 = vadd.f32 0.0, %v299
    %v301 = vpop.f32.mrb[0].mxu0
    %302 = vmatprep.mubr.f32.mxu0 0.0
    %303 = vmatmul.mubr.f32.gmra.mrb[0].mxu0 %v73
    %v304 = vpop.f32.mrb[0].mxu0
    %v305 = vadd.f32 0.0, %v304
    %v306 = vpop.f32.mrb[0].mxu0
    %307 = vmatprep.mubr.f32.mxu0 0.0
    %308 = vmatmul.mubr.f32.gmra.mrb[0].mxu0 %v74
    %v309 = vpop.f32.mrb[0].mxu0
    %v310 = vadd.f32 0.0, %v309
    %v311 = vpop.f32.mrb[0].mxu0
    %312 = vmatprep.mubr.f32.mxu0 0.0
    %313 = vmatmul.mubr.f32.gmra.mrb[0].mxu0 %v75
    %v314 = vpop.f32.mrb[0].mxu0
    %v315 = vadd.f32 0.0, %v314
    %v316 = vpop.f32.mrb[0].mxu0
    %317 = vmatprep.mubr.f32.mxu0 0.0
    %318 = vmatmul.mubr.f32.gmra.mrb[0].mxu0 %v76
    %v319 = vpop.f32.mrb[0].mxu0
    %v320 = vadd.f32 0.0, %v319
    %v321 = vpop.f32.mrb[0].mxu0
    %322 = vmatprep.mubr.f32.mxu0 0.0
    %323 = vmatmul.mubr.f32.gmra.mrb[0].mxu0 %v77
    %v324 = vpop.f32.mrb[0].mxu0
    %v325 = vadd.f32 0.0, %v324
    %v326 = vpop.f32.mrb[0].mxu0
    %327 = vmatprep.mubr.f32.mxu0 0.0
    %328 = vmatmul.mubr.f32.gmra.mrb[0].mxu0 %v78
    %v329 = vpop.f32.mrb[0].mxu0
    %v330 = vadd.f32 0.0, %v329
    %v331 = vpop.f32.mrb[0].mxu0
    %332 = vmatprep.mubr.f32.mxu0 0.0
    %333 = vmatmul.mubr.f32.gmra.mrb[0].mxu0 %v79
    %v334 = vpop.f32.mrb[0].mxu0
    %v335 = vadd.f32 0.0, %v334
    %v336 = vpop.f32.mrb[0].mxu0
    %337 = vmatprep.mubr.f32.mxu0 0.0
    %338 = vmatmul.mubr.f32.gmra.mrb[0].mxu0 %v80
    %v339 = vpop.f32.mrb[0].mxu0
    %v340 = vadd.f32 0.0, %v339
    %v341 = vpop.f32.mrb[0].mxu0
    %342 = vmatprep.mubr.f32.mxu0 0.0
    %343 = vmatmul.mubr.f32.gmra.mrb[0].mxu0 %v81
    %v344 = vpop.f32.mrb[0].mxu0
    %v345 = vadd.f32 0.0, %v344
    %v346 = vpop.f32.mrb[0].mxu0
    %347 = vmatprep.mubr.f32.mxu0 0.0
    %348 = vmatmul.mubr.f32.gmra.mrb[0].mxu0 %v82
    %v349 = vpop.f32.mrb[0].mxu0
    %v350 = vadd.f32 0.0, %v349
    %v351 = vpop.f32.mrb[0].mxu0
    %352 = vmatprep.mubr.f32.mxu0 0.0
    %353 = vmatmul.mubr.f32.gmra.mrb[0].mxu0 %v83
    %v354 = vpop.f32.mrb[0].mxu0
    %v355 = vadd.f32 0.0, %v354
    %v356 = vpop.f32.mrb[0].mxu0
    %357 = vmatprep.mubr.f32.mxu0 0.0
    %358 = vmatmul.mubr.f32.gmra.mrb[0].mxu0 %v84
    %v359 = vpop.f32.mrb[0].mxu0
    %v360 = vadd.f32 0.0, %v359
    %v361 = vpop.f32.mrb[0].mxu0
    %362 = vmatprep.mubr.f32.mxu0 0.0
    %363 = vmatmul.mubr.f32.gmra.mrb[0].mxu0 %v85
    %v364 = vpop.f32.mrb[0].mxu0
    %v365 = vadd.f32 0.0, %v364
    %v366 = vpop.f32.mrb[0].mxu0
    %367 = vmatprep.mubr.f32.mxu0 0.0
    %368 = vmatmul.mubr.f32.gmra.mrb[0].mxu0 %v86
    %v369 = vpop.f32.mrb[0].mxu0
    %v370 = vadd.f32 0.0, %v369
    %v371 = vpop.f32.mrb[0].mxu0
    %372 = vmatprep.mubr.f32.mxu0 0.0
    %373 = vmatmul.mubr.f32.gmra.mrb[0].mxu0 %v87
    %v374 = vpop.f32.mrb[0].mxu0
    %v375 = vadd.f32 0.0, %v374
    %v376 = vpop.f32.mrb[0].mxu0
    %377 = vmatprep.mubr.f32.mxu0 0.0
    %378 = vmatmul.mubr.f32.gmra.mrb[0].mxu0 %v88
    %v379 = vpop.f32.mrb[0].mxu0
    %v380 = vadd.f32 0.0, %v379
    %v381 = vpop.f32.mrb[0].mxu0
    %382 = vmatprep.mubr.f32.mxu0 0.0
    %383 = vmatmul.mubr.f32.gmra.mrb[0].mxu0 %v89
    %v384 = vpop.f32.mrb[0].mxu0
    %v385 = vadd.f32 0.0, %v384
    %v386 = vpop.f32.mrb[0].mxu0
    %387 = vmatprep.mubr.f32.mxu0 0.0
    %388 = vmatmul.mubr.f32.gmra.mrb[0].mxu0 %v90
    %v389 = vpop.f32.mrb[0].mxu0
    %v390 = vadd.f32 0.0, %v389
    %v391 = vpop.f32.mrb[0].mxu0
    %392 = vmatprep.mubr.f32.mxu0 0.0
    %393 = vmatmul.mubr.f32.gmra.mrb[0].mxu0 %v91
    %v394 = vpop.f32.mrb[0].mxu0
    %v395 = vadd.f32 0.0, %v394
    %v396 = vpop.f32.mrb[0].mxu0
    %397 = vmatprep.mubr.f32.mxu0 0.0
    %398 = vmatmul.mubr.f32.gmra.mrb[0].mxu0 %v92
    %v399 = vpop.f32.mrb[0].mxu0
    %v400 = vadd.f32 0.0, %v399
    %v401 = vpop.f32.mrb[0].mxu0
    %402 = vmatprep.mubr.f32.mxu0 0.0
    %403 = vmatmul.mubr.f32.gmra.mrb[0].mxu0 %v93
    %v404 = vpop.f32.mrb[0].mxu0
    %v405 = vadd.f32 0.0, %v404
    %v406 = vpop.f32.mrb[0].mxu0
    %407 = vmatprep.mubr.f32.mxu0 0.0
    %408 = vmatmul.mubr.f32.gmra.mrb[0].mxu0 %v94
    %v409 = vpop.f32.mrb[0].mxu0
    %v410 = vadd.f32 0.0, %v409
    %v411 = vpop.f32.mrb[0].mxu0
    %412 = vmatprep.mubr.f32.mxu0 0.0
    %413 = vmatmul.mubr.f32.gmra.mrb[0].mxu0 %v95
    %v414 = vpop.f32.mrb[0].mxu0
    %v415 = vadd.f32 0.0, %v414
    %v416 = vpop.f32.mrb[0].mxu0
    %417 = vmatprep.mubr.f32.mxu0 0.0
    %418 = vmatmul.mubr.f32.gmra.mrb[0].mxu0 %v96
    %v419 = vpop.f32.mrb[0].mxu0
    %v420 = vadd.f32 0.0, %v419
    %v421 = vpop.f32.mrb[0].mxu0
    %422 = vmatprep.mubr.f32.mxu0 0.0
    %423 = vmatmul.mubr.f32.gmra.mrb[0].mxu0 %v97
    %v424 = vpop.f32.mrb[0].mxu0
    %v425 = vadd.f32 0.0, %v424
    %v426 = vpop.f32.mrb[0].mxu0
    %427 = vmatprep.mubr.f32.mxu0 0.0
    %428 = vmatmul.mubr.f32.gmra.mrb[0].mxu0 %v98
    %v429 = vpop.f32.mrb[0].mxu0
    %v430 = vadd.f32 0.0, %v429
    %v431 = vpop.f32.mrb[0].mxu0
    %432 = vmatprep.mubr.f32.mxu0 0.0
    %433 = vmatmul.mubr.f32.gmra.mrb[0].mxu0 %v99
    %v434 = vpop.f32.mrb[0].mxu0
    %v435 = vadd.f32 0.0, %v434
    %v436 = vpop.f32.mrb[0].mxu0
    %437 = vmatprep.mubr.f32.mxu0 0.0
    %438 = vmatmul.mubr.f32.gmra.mrb[0].mxu0 %v100
    %v439 = vpop.f32.mrb[0].mxu0
    %v440 = vadd.f32 0.0, %v439
    %v441 = vpop.f32.mrb[0].mxu0
    %442 = vmatprep.mubr.f32.mxu0 0.0
    %443 = vmatmul.mubr.f32.gmra.mrb[0].mxu0 %v101
    %v444 = vpop.f32.mrb[0].mxu0
    %v445 = vadd.f32 0.0, %v444
    %v446 = vpop.f32.mrb[0].mxu0
    %447 = vdwg.mxu0
    %v452 = vcombine.high %v189, %v189
    %v454 = vunpack.c.l.s4 1966171168
    %v455 = vunpack.c.0.s8 %v454
    %v456 = vlaneseq
    %v457 = vshrl.u32 %v456, 7
    %v458 = vsub.s32 %v455, %v457
    %v459 = vrot.slane %v189, %v458
    %v461 = vunpack.c.l.s4 1966171168
    %v462 = vunpack.c.0.s8 %v461
    %v463 = vlaneseq
    %v464 = vshrl.u32 %v463, 7
    %v465 = vsub.s32 %v462, %v464
    %v466 = vrot.slane %v452, %v465
    %v467 = vcombine.high %v459, %v459
    %v468 = vcombine.high %v466, %v466
    %v470 = vunpack.c.l.s4 1966171168
    %v471 = vunpack.c.0.s8 %v470
    %v472 = vlaneseq
    %v473 = vshrl.u32 %v472, 7
    %v474 = vsub.s32 %v471, %v473
    %v475 = vrot.slane %v459, %v474
    %v477 = vunpack.c.l.s4 1966171168
    %v478 = vunpack.c.0.s8 %v477
    %v479 = vlaneseq
    %v480 = vshrl.u32 %v479, 7
    %v481 = vsub.s32 %v478, %v480
    %v482 = vrot.slane %v466, %v481
    %v484 = vunpack.c.l.s4 1966171168
    %v485 = vunpack.c.0.s8 %v484
    %v486 = vlaneseq
    %v487 = vshrl.u32 %v486, 7
    %v488 = vsub.s32 %v485, %v487
    %v489 = vrot.slane %v467, %v488
    %v491 = vunpack.c.l.s4 1966171168
    %v492 = vunpack.c.0.s8 %v491
    %v493 = vlaneseq
    %v494 = vshrl.u32 %v493, 7
    %v495 = vsub.s32 %v492, %v494
    %v496 = vrot.slane %v468, %v495
    %v497 = vcombine.high %v475, %v475
    %v498 = vcombine.high %v482, %v482
    %v499 = vcombine.high %v489, %v489
    %v500 = vcombine.high %v496, %v496
    %v501 = vcombine.high %v194, %v194
    %v503 = vunpack.c.l.s4 1966171168
    %v504 = vunpack.c.0.s8 %v503
    %v505 = vlaneseq
    %v506 = vshrl.u32 %v505, 7
    %v507 = vsub.s32 %v504, %v506
    %v508 = vrot.slane %v194, %v507
    %v510 = vunpack.c.l.s4 1966171168
    %v511 = vunpack.c.0.s8 %v510
    %v512 = vlaneseq
    %v513 = vshrl.u32 %v512, 7
    %v514 = vsub.s32 %v511, %v513
    %v515 = vrot.slane %v501, %v514
    %v516 = vcombine.high %v508, %v508
    %v517 = vcombine.high %v515, %v515
    %v519 = vunpack.c.l.s4 1966171168
    %v520 = vunpack.c.0.s8 %v519
    %v521 = vlaneseq
    %v522 = vshrl.u32 %v521, 7
    %v523 = vsub.s32 %v520, %v522
    %v524 = vrot.slane %v508, %v523
    %v526 = vunpack.c.l.s4 1966171168
    %v527 = vunpack.c.0.s8 %v526
    %v528 = vlaneseq
    %v529 = vshrl.u32 %v528, 7
    %v530 = vsub.s32 %v527, %v529
    %v531 = vrot.slane %v515, %v530
    %v533 = vunpack.c.l.s4 1966171168
    %v534 = vunpack.c.0.s8 %v533
    %v535 = vlaneseq
    %v536 = vshrl.u32 %v535, 7
    %v537 = vsub.s32 %v534, %v536
    %v538 = vrot.slane %v516, %v537
    %v540 = vunpack.c.l.s4 1966171168
    %v541 = vunpack.c.0.s8 %v540
    %v542 = vlaneseq
    %v543 = vshrl.u32 %v542, 7
    %v544 = vsub.s32 %v541, %v543
    %v545 = vrot.slane %v517, %v544
    %v546 = vcombine.high %v524, %v524
    %v547 = vcombine.high %v531, %v531
    %v548 = vcombine.high %v538, %v538
    %v549 = vcombine.high %v545, %v545
    %v550 = vcombine.high %v199, %v199
    %v552 = vunpack.c.l.s4 1966171168
    %v553 = vunpack.c.0.s8 %v552
    %v554 = vlaneseq
    %v555 = vshrl.u32 %v554, 7
    %v556 = vsub.s32 %v553, %v555
    %v557 = vrot.slane %v199, %v556
    %v559 = vunpack.c.l.s4 1966171168
    %v560 = vunpack.c.0.s8 %v559
    %v561 = vlaneseq
    %v562 = vshrl.u32 %v561, 7
    %v563 = vsub.s32 %v560, %v562
    %v564 = vrot.slane %v550, %v563
    %v565 = vcombine.high %v557, %v557
    %v566 = vcombine.high %v564, %v564
    %v568 = vunpack.c.l.s4 1966171168
    %v569 = vunpack.c.0.s8 %v568
    %v570 = vlaneseq
    %v571 = vshrl.u32 %v570, 7
    %v572 = vsub.s32 %v569, %v571
    %v573 = vrot.slane %v557, %v572
    %v575 = vunpack.c.l.s4 1966171168
    %v576 = vunpack.c.0.s8 %v575
    %v577 = vlaneseq
    %v578 = vshrl.u32 %v577, 7
    %v579 = vsub.s32 %v576, %v578
    %v580 = vrot.slane %v564, %v579
    %v582 = vunpack.c.l.s4 1966171168
    %v583 = vunpack.c.0.s8 %v582
    %v584 = vlaneseq
    %v585 = vshrl.u32 %v584, 7
    %v586 = vsub.s32 %v583, %v585
    %v587 = vrot.slane %v565, %v586
    %v589 = vunpack.c.l.s4 1966171168
    %v590 = vunpack.c.0.s8 %v589
    %v591 = vlaneseq
    %v592 = vshrl.u32 %v591, 7
    %v593 = vsub.s32 %v590, %v592
    %v594 = vrot.slane %v566, %v593
    %v595 = vcombine.high %v573, %v573
    %v596 = vcombine.high %v580, %v580
    %v597 = vcombine.high %v587, %v587
    %v598 = vcombine.high %v594, %v594
    %v599 = vcombine.high %v204, %v204
    %v601 = vunpack.c.l.s4 1966171168
    %v602 = vunpack.c.0.s8 %v601
    %v603 = vlaneseq
    %v604 = vshrl.u32 %v603, 7
    %v605 = vsub.s32 %v602, %v604
    %v606 = vrot.slane %v204, %v605
    %v608 = vunpack.c.l.s4 1966171168
    %v609 = vunpack.c.0.s8 %v608
    %v610 = vlaneseq
    %v611 = vshrl.u32 %v610, 7
    %v612 = vsub.s32 %v609, %v611
    %v613 = vrot.slane %v599, %v612
    %v614 = vcombine.high %v606, %v606
    %v615 = vcombine.high %v613, %v613
    %v617 = vunpack.c.l.s4 1966171168
    %v618 = vunpack.c.0.s8 %v617
    %v619 = vlaneseq
    %v620 = vshrl.u32 %v619, 7
    %v621 = vsub.s32 %v618, %v620
    %v622 = vrot.slane %v606, %v621
    %v624 = vunpack.c.l.s4 1966171168
    %v625 = vunpack.c.0.s8 %v624
    %v626 = vlaneseq
    %v627 = vshrl.u32 %v626, 7
    %v628 = vsub.s32 %v625, %v627
    %v629 = vrot.slane %v613, %v628
    %v631 = vunpack.c.l.s4 1966171168
    %v632 = vunpack.c.0.s8 %v631
    %v633 = vlaneseq
    %v634 = vshrl.u32 %v633, 7
    %v635 = vsub.s32 %v632, %v634
    %v636 = vrot.slane %v614, %v635
    %v638 = vunpack.c.l.s4 1966171168
    %v639 = vunpack.c.0.s8 %v638
    %v640 = vlaneseq
    %v641 = vshrl.u32 %v640, 7
    %v642 = vsub.s32 %v639, %v641
    %v643 = vrot.slane %v615, %v642
    %v644 = vcombine.high %v622, %v622
    %v645 = vcombine.high %v629, %v629
    %v646 = vcombine.high %v636, %v636
    %v647 = vcombine.high %v643, %v643
    %v648 = vlaneseq
    %v649 = vshrl.u32 %v648, 7
    %v650 = vsub.s32 0, %v649
    %v651 = vrot.slane %v475, %v650
    %v652 = vlaneseq
    %v653 = vshrl.u32 %v652, 7
    %v654 = vsub.s32 0, %v653
    %v655 = vrot.slane %v489, %v654
    %v656 = vlaneseq
    %v657 = vshrl.u32 %v656, 7
    %v658 = vsub.s32 0, %v657
    %v659 = vrot.slane %v497, %v658
    %v660 = vlaneseq
    %v661 = vshrl.u32 %v660, 7
    %v662 = vsub.s32 0, %v661
    %v663 = vrot.slane %v499, %v662
    %v664 = vlaneseq
    %v665 = vshrl.u32 %v664, 7
    %v666 = vsub.s32 0, %v665
    %v667 = vrot.slane %v482, %v666
    %v668 = vlaneseq
    %v669 = vshrl.u32 %v668, 7
    %v670 = vsub.s32 0, %v669
    %v671 = vrot.slane %v496, %v670
    %v672 = vlaneseq
    %v673 = vshrl.u32 %v672, 7
    %v674 = vsub.s32 0, %v673
    %v675 = vrot.slane %v498, %v674
    %v676 = vlaneseq
    %v677 = vshrl.u32 %v676, 7
    %v678 = vsub.s32 0, %v677
    %v679 = vrot.slane %v500, %v678
    %v680 = vlaneseq
    %v681 = vshrl.u32 %v680, 7
    %v682 = vsub.s32 0, %v681
    %v683 = vrot.slane %v524, %v682
    %v684 = vlaneseq
    %v685 = vshrl.u32 %v684, 7
    %v686 = vsub.s32 0, %v685
    %v687 = vrot.slane %v538, %v686
    %v688 = vlaneseq
    %v689 = vshrl.u32 %v688, 7
    %v690 = vsub.s32 0, %v689
    %v691 = vrot.slane %v546, %v690
    %v692 = vlaneseq
    %v693 = vshrl.u32 %v692, 7
    %v694 = vsub.s32 0, %v693
    %v695 = vrot.slane %v548, %v694
    %v696 = vlaneseq
    %v697 = vshrl.u32 %v696, 7
    %v698 = vsub.s32 0, %v697
    %v699 = vrot.slane %v531, %v698
    %v700 = vlaneseq
    %v701 = vshrl.u32 %v700, 7
    %v702 = vsub.s32 0, %v701
    %v703 = vrot.slane %v545, %v702
    %v704 = vlaneseq
    %v705 = vshrl.u32 %v704, 7
    %v706 = vsub.s32 0, %v705
    %v707 = vrot.slane %v547, %v706
    %v708 = vlaneseq
    %v709 = vshrl.u32 %v708, 7
    %v710 = vsub.s32 0, %v709
    %v711 = vrot.slane %v549, %v710
    %v712 = vlaneseq
    %v713 = vshrl.u32 %v712, 7
    %v714 = vsub.s32 0, %v713
    %v715 = vrot.slane %v573, %v714
    %v716 = vlaneseq
    %v717 = vshrl.u32 %v716, 7
    %v718 = vsub.s32 0, %v717
    %v719 = vrot.slane %v587, %v718
    %v720 = vlaneseq
    %v721 = vshrl.u32 %v720, 7
    %v722 = vsub.s32 0, %v721
    %v723 = vrot.slane %v595, %v722
    %v724 = vlaneseq
    %v725 = vshrl.u32 %v724, 7
    %v726 = vsub.s32 0, %v725
    %v727 = vrot.slane %v597, %v726
    %v728 = vlaneseq
    %v729 = vshrl.u32 %v728, 7
    %v730 = vsub.s32 0, %v729
    %v731 = vrot.slane %v580, %v730
    %v732 = vlaneseq
    %v733 = vshrl.u32 %v732, 7
    %v734 = vsub.s32 0, %v733
    %v735 = vrot.slane %v594, %v734
    %v736 = vlaneseq
    %v737 = vshrl.u32 %v736, 7
    %v738 = vsub.s32 0, %v737
    %v739 = vrot.slane %v596, %v738
    %v740 = vlaneseq
    %v741 = vshrl.u32 %v740, 7
    %v742 = vsub.s32 0, %v741
    %v743 = vrot.slane %v598, %v742
    %v744 = vlaneseq
    %v745 = vshrl.u32 %v744, 7
    %v746 = vsub.s32 0, %v745
    %v747 = vrot.slane %v622, %v746
    %v748 = vlaneseq
    %v749 = vshrl.u32 %v748, 7
    %v750 = vsub.s32 0, %v749
    %v751 = vrot.slane %v636, %v750
    %v752 = vlaneseq
    %v753 = vshrl.u32 %v752, 7
    %v754 = vsub.s32 0, %v753
    %v755 = vrot.slane %v644, %v754
    %v756 = vlaneseq
    %v757 = vshrl.u32 %v756, 7
    %v758 = vsub.s32 0, %v757
    %v759 = vrot.slane %v646, %v758
    %v760 = vlaneseq
    %v761 = vshrl.u32 %v760, 7
    %v762 = vsub.s32 0, %v761
    %v763 = vrot.slane %v629, %v762
    %v764 = vlaneseq
    %v765 = vshrl.u32 %v764, 7
    %v766 = vsub.s32 0, %v765
    %v767 = vrot.slane %v643, %v766
    %v768 = vlaneseq
    %v769 = vshrl.u32 %v768, 7
    %v770 = vsub.s32 0, %v769
    %v771 = vrot.slane %v645, %v770
    %v772 = vlaneseq
    %v773 = vshrl.u32 %v772, 7
    %v774 = vsub.s32 0, %v773
    %v775 = vrot.slane %v647, %v774
    %v808 = vadd.f32 %v651, %v290
    %v809 = vadd.f32 %v655, %v295
    %v810 = vadd.f32 %v659, %v300
    %v811 = vadd.f32 %v663, %v305
    %v812 = vadd.f32 %v667, %v310
    %v813 = vadd.f32 %v671, %v315
    %v814 = vadd.f32 %v675, %v320
    %v815 = vadd.f32 %v679, %v325
    %v816 = vadd.f32 %v683, %v330
    %v817 = vadd.f32 %v687, %v335
    %v818 = vadd.f32 %v691, %v340
    %v819 = vadd.f32 %v695, %v345
    %v820 = vadd.f32 %v699, %v350
    %v821 = vadd.f32 %v703, %v355
    %v822 = vadd.f32 %v707, %v360
    %v823 = vadd.f32 %v711, %v365
    %v824 = vadd.f32 %v715, %v370
    %v825 = vadd.f32 %v719, %v375
    %v826 = vadd.f32 %v723, %v380
    %v827 = vadd.f32 %v727, %v385
    %v828 = vadd.f32 %v731, %v390
    %v829 = vadd.f32 %v735, %v395
    %v830 = vadd.f32 %v739, %v400
    %v831 = vadd.f32 %v743, %v405
    %v832 = vadd.f32 %v747, %v410
    %v833 = vadd.f32 %v751, %v415
    %v834 = vadd.f32 %v755, %v420
    %v835 = vadd.f32 %v759, %v425
    %v836 = vadd.f32 %v763, %v430
    %v837 = vadd.f32 %v767, %v435
    %v838 = vadd.f32 %v771, %v440
    %v839 = vadd.f32 %v775, %v445
    %v840 = vld [vmem:[%s4] sm:$0x1]
    %v842 = vlaneseq
    %v843 = vshrl.u32 %v842, 7
    %v844 = vsub.s32 0, %v843
    %v845 = vrot.slane %v840, %v844
    %v847 = vadd.f32 %v808, %v845
    %v848 = vadd.f32 %v809, %v845
    %v849 = vadd.f32 %v810, %v845
    %v850 = vadd.f32 %v811, %v845
    %v851 = vadd.f32 %v812, %v845
    %v852 = vadd.f32 %v813, %v845
    %v853 = vadd.f32 %v814, %v845
    %v854 = vadd.f32 %v815, %v845
    %v855 = vadd.f32 %v816, %v845
    %v856 = vadd.f32 %v817, %v845
    %v857 = vadd.f32 %v818, %v845
    %v858 = vadd.f32 %v819, %v845
    %v859 = vadd.f32 %v820, %v845
    %v860 = vadd.f32 %v821, %v845
    %v861 = vadd.f32 %v822, %v845
    %v862 = vadd.f32 %v823, %v845
    %v863 = vadd.f32 %v824, %v845
    %v864 = vadd.f32 %v825, %v845
    %v865 = vadd.f32 %v826, %v845
    %v866 = vadd.f32 %v827, %v845
    %v867 = vadd.f32 %v828, %v845
    %v868 = vadd.f32 %v829, %v845
    %v869 = vadd.f32 %v830, %v845
    %v870 = vadd.f32 %v831, %v845
    %v871 = vadd.f32 %v832, %v845
    %v872 = vadd.f32 %v833, %v845
    %v873 = vadd.f32 %v834, %v845
    %v874 = vadd.f32 %v835, %v845
    %v875 = vadd.f32 %v836, %v845
    %v876 = vadd.f32 %v837, %v845
    %v877 = vadd.f32 %v838, %v845
    %v878 = vadd.f32 %v839, %v845
    %v879 = vtanh.pop %v847
    %v880 = vtanh.pop %v848
    %v881 = vtanh.pop %v849
    %v882 = vtanh.pop %v850
    %v883 = vtanh.pop %v851
    %v884 = vtanh.pop %v852
    %v885 = vtanh.pop %v853
    %v886 = vtanh.pop %v854
    %v887 = vtanh.pop %v855
    %v888 = vtanh.pop %v856
    %v889 = vtanh.pop %v857
    %v890 = vtanh.pop %v858
    %v891 = vtanh.pop %v859
    %v892 = vtanh.pop %v860
    %v893 = vtanh.pop %v861
    %v894 = vtanh.pop %v862
    %v895 = vtanh.pop %v863
    %v896 = vtanh.pop %v864
    %v897 = vtanh.pop %v865
    %v898 = vtanh.pop %v866
    %v899 = vtanh.pop %v867
    %v900 = vtanh.pop %v868
    %v901 = vtanh.pop %v869
    %v902 = vtanh.pop %v870
    %v903 = vtanh.pop %v871
    %v904 = vtanh.pop %v872
    %v905 = vtanh.pop %v873
    %v906 = vtanh.pop %v874
    %v907 = vtanh.pop %v875
    %v908 = vtanh.pop %v876
    %v909 = vtanh.pop %v877
    %v910 = vtanh.pop %v878
    %v911 = vld [vmem:[%s5] sm:$0xff]
    %v912 = vld [vmem:[%s5 + $0x8] sm:$0xff]
    %v913 = vld [vmem:[%s5 + $0x10] sm:$0xff]
    %v914 = vld [vmem:[%s5 + $0x18] sm:$0xff]
    %v915 = vld [vmem:[%s5 + $0x20] sm:$0xff]
    %v916 = vld [vmem:[%s5 + $0x28] sm:$0xff]
    %v917 = vld [vmem:[%s5 + $0x30] sm:$0xff]
    %v918 = vld [vmem:[%s5 + $0x38] sm:$0xff]
    %v919 = vld [vmem:[%s5 + $0x40] sm:$0xff]
    %v920 = vld [vmem:[%s5 + $0x48] sm:$0xff]
    %v921 = vld [vmem:[%s5 + $0x50] sm:$0xff]
    %v922 = vld [vmem:[%s5 + $0x58] sm:$0xff]
    %v923 = vld [vmem:[%s5 + $0x60] sm:$0xff]
    %v924 = vld [vmem:[%s5 + $0x68] sm:$0xff]
    %v925 = vld [vmem:[%s5 + $0x70] sm:$0xff]
    %v926 = vld [vmem:[%s5 + $0x78] sm:$0xff]
    %927 = vmatprep.subr.mxu0 0.0
    %928 = vmatpush1.msra.mxu0 %v911
    %929 = vmatprep.subr.mxu0 0.0
    %930 = vmatpush1.msra.mxu0 %v912
    %931 = vmatprep.subr.mxu0 0.0
    %932 = vmatpush1.msra.mxu0 %v913
    %933 = vmatprep.subr.mxu0 0.0
    %934 = vmatpush1.msra.mxu0 %v914
    %935 = vmatprep.subr.mxu0 0.0
    %936 = vmatpush1.msra.mxu0 %v915
    %937 = vmatprep.subr.mxu0 0.0
    %938 = vmatpush1.msra.mxu0 %v916
    %939 = vmatprep.subr.mxu0 0.0
    %940 = vmatpush1.msra.mxu0 %v917
    %941 = vmatprep.subr.mxu0 0.0
    %942 = vmatpush1.msra.mxu0 %v918
    %943 = vmatprep.subr.mxu0 0.0
    %944 = vmatpush1.msra.mxu0 %v919
    %945 = vmatprep.subr.mxu0 0.0
    %946 = vmatpush1.msra.mxu0 %v920
    %947 = vmatprep.subr.mxu0 0.0
    %948 = vmatpush1.msra.mxu0 %v921
    %949 = vmatprep.subr.mxu0 0.0
    %950 = vmatpush1.msra.mxu0 %v922
    %951 = vmatprep.subr.mxu0 0.0
    %952 = vmatpush1.msra.mxu0 %v923
    %953 = vmatprep.subr.mxu0 0.0
    %954 = vmatpush1.msra.mxu0 %v924
    %955 = vmatprep.subr.mxu0 0.0
    %956 = vmatpush1.msra.mxu0 %v925
    %957 = vmatprep.subr.mxu0 0.0
    %958 = vmatpush1.msra.mxu0 %v926
    %959 = vmatprep.subr.mxu0 0.0
    %960 = vmatpush1.msra.mxu0 0.0
    %961 = vmatprep.subr.mxu0 0.0
    %962 = vmatpush1.msra.mxu0 0.0
    %963 = vmatprep.subr.mxu0 0.0
    %964 = vmatpush1.msra.mxu0 0.0
    %965 = vmatprep.subr.mxu0 0.0
    %966 = vmatpush1.msra.mxu0 0.0
    %967 = vmatprep.subr.mxu0 0.0
    %968 = vmatpush1.msra.mxu0 0.0
    %969 = vmatprep.subr.mxu0 0.0
    %970 = vmatpush1.msra.mxu0 0.0
    %971 = vmatprep.subr.mxu0 0.0
    %972 = vmatpush1.msra.mxu0 0.0
    %973 = vmatprep.subr.mxu0 0.0
    %974 = vmatpush1.msra.mxu0 0.0
    %975 = vmatprep.subr.mxu0 0.0
    %976 = vmatpush1.msra.mxu0 0.0
    %977 = vmatprep.subr.mxu0 0.0
    %978 = vmatpush1.msra.mxu0 0.0
    %979 = vmatprep.subr.mxu0 0.0
    %980 = vmatpush1.msra.mxu0 0.0
    %981 = vmatprep.subr.mxu0 0.0
    %982 = vmatpush1.msra.mxu0 0.0
    %983 = vmatprep.subr.mxu0 0.0
    %984 = vmatpush1.msra.mxu0 0.0
    %985 = vmatprep.subr.mxu0 0.0
    %986 = vmatpush1.msra.mxu0 0.0
    %987 = vmatprep.subr.mxu0 0.0
    %988 = vmatpush1.msra.mxu0 0.0
    %989 = vmatprep.subr.mxu0 0.0
    %990 = vmatpush1.msra.mxu0 0.0
    %991 = vmatprep.mubr.f32.mxu0 0.0
    %992 = vmatmul.mubr.f32.gmra.mrb[0].mxu0 %v879
    %v993 = vpop.f32.mrb[0].mxu0
    %v994 = vadd.f32 0.0, %v993
    %v995 = vpop.f32.mrb[0].mxu0
    %996 = vmatprep.mubr.f32.mxu0 0.0
    %997 = vmatmul.mubr.f32.gmra.mrb[0].mxu0 %v880
    %v998 = vpop.f32.mrb[0].mxu0
    %v999 = vadd.f32 0.0, %v998
    %v1000 = vpop.f32.mrb[0].mxu0
    %1001 = vmatprep.mubr.f32.mxu0 0.0
    %1002 = vmatmul.mubr.f32.gmra.mrb[0].mxu0 %v881
    %v1003 = vpop.f32.mrb[0].mxu0
    %v1004 = vadd.f32 0.0, %v1003
    %v1005 = vpop.f32.mrb[0].mxu0
    %1006 = vmatprep.mubr.f32.mxu0 0.0
    %1007 = vmatmul.mubr.f32.gmra.mrb[0].mxu0 %v882
    %v1008 = vpop.f32.mrb[0].mxu0
    %v1009 = vadd.f32 0.0, %v1008
    %v1010 = vpop.f32.mrb[0].mxu0
    %1011 = vmatprep.mubr.f32.mxu0 0.0
    %1012 = vmatmul.mubr.f32.gmra.mrb[0].mxu0 %v883
    %v1013 = vpop.f32.mrb[0].mxu0
    %v1014 = vadd.f32 0.0, %v1013
    %v1015 = vpop.f32.mrb[0].mxu0
    %1016 = vmatprep.mubr.f32.mxu0 0.0
    %1017 = vmatmul.mubr.f32.gmra.mrb[0].mxu0 %v884
    %v1018 = vpop.f32.mrb[0].mxu0
    %v1019 = vadd.f32 0.0, %v1018
    %v1020 = vpop.f32.mrb[0].mxu0
    %1021 = vmatprep.mubr.f32.mxu0 0.0
    %1022 = vmatmul.mubr.f32.gmra.mrb[0].mxu0 %v885
    %v1023 = vpop.f32.mrb[0].mxu0
    %v1024 = vadd.f32 0.0, %v1023
    %v1025 = vpop.f32.mrb[0].mxu0
    %1026 = vmatprep.mubr.f32.mxu0 0.0
    %1027 = vmatmul.mubr.f32.gmra.mrb[0].mxu0 %v886
    %v1028 = vpop.f32.mrb[0].mxu0
    %v1029 = vadd.f32 0.0, %v1028
    %v1030 = vpop.f32.mrb[0].mxu0
    %1031 = vmatprep.mubr.f32.mxu0 0.0
    %1032 = vmatmul.mubr.f32.gmra.mrb[0].mxu0 %v887
    %v1033 = vpop.f32.mrb[0].mxu0
    %v1034 = vadd.f32 0.0, %v1033
    %v1035 = vpop.f32.mrb[0].mxu0
    %1036 = vmatprep.mubr.f32.mxu0 0.0
    %1037 = vmatmul.mubr.f32.gmra.mrb[0].mxu0 %v888
    %v1038 = vpop.f32.mrb[0].mxu0
    %v1039 = vadd.f32 0.0, %v1038
    %v1040 = vpop.f32.mrb[0].mxu0
    %1041 = vmatprep.mubr.f32.mxu0 0.0
    %1042 = vmatmul.mubr.f32.gmra.mrb[0].mxu0 %v889
    %v1043 = vpop.f32.mrb[0].mxu0
    %v1044 = vadd.f32 0.0, %v1043
    %v1045 = vpop.f32.mrb[0].mxu0
    %1046 = vmatprep.mubr.f32.mxu0 0.0
    %1047 = vmatmul.mubr.f32.gmra.mrb[0].mxu0 %v890
    %v1048 = vpop.f32.mrb[0].mxu0
    %v1049 = vadd.f32 0.0, %v1048
    %v1050 = vpop.f32.mrb[0].mxu0
    %1051 = vmatprep.mubr.f32.mxu0 0.0
    %1052 = vmatmul.mubr.f32.gmra.mrb[0].mxu0 %v891
    %v1053 = vpop.f32.mrb[0].mxu0
    %v1054 = vadd.f32 0.0, %v1053
    %v1055 = vpop.f32.mrb[0].mxu0
    %1056 = vmatprep.mubr.f32.mxu0 0.0
    %1057 = vmatmul.mubr.f32.gmra.mrb[0].mxu0 %v892
    %v1058 = vpop.f32.mrb[0].mxu0
    %v1059 = vadd.f32 0.0, %v1058
    %v1060 = vpop.f32.mrb[0].mxu0
    %1061 = vmatprep.mubr.f32.mxu0 0.0
    %1062 = vmatmul.mubr.f32.gmra.mrb[0].mxu0 %v893
    %v1063 = vpop.f32.mrb[0].mxu0
    %v1064 = vadd.f32 0.0, %v1063
    %v1065 = vpop.f32.mrb[0].mxu0
    %1066 = vmatprep.mubr.f32.mxu0 0.0
    %1067 = vmatmul.mubr.f32.gmra.mrb[0].mxu0 %v894
    %v1068 = vpop.f32.mrb[0].mxu0
    %v1069 = vadd.f32 0.0, %v1068
    %v1070 = vpop.f32.mrb[0].mxu0
    %1071 = vmatprep.mubr.f32.mxu0 0.0
    %1072 = vmatmul.mubr.f32.gmra.mrb[0].mxu0 %v895
    %v1073 = vpop.f32.mrb[0].mxu0
    %v1074 = vadd.f32 0.0, %v1073
    %v1075 = vpop.f32.mrb[0].mxu0
    %1076 = vmatprep.mubr.f32.mxu0 0.0
    %1077 = vmatmul.mubr.f32.gmra.mrb[0].mxu0 %v896
    %v1078 = vpop.f32.mrb[0].mxu0
    %v1079 = vadd.f32 0.0, %v1078
    %v1080 = vpop.f32.mrb[0].mxu0
    %1081 = vmatprep.mubr.f32.mxu0 0.0
    %1082 = vmatmul.mubr.f32.gmra.mrb[0].mxu0 %v897
    %v1083 = vpop.f32.mrb[0].mxu0
    %v1084 = vadd.f32 0.0, %v1083
    %v1085 = vpop.f32.mrb[0].mxu0
    %1086 = vmatprep.mubr.f32.mxu0 0.0
    %1087 = vmatmul.mubr.f32.gmra.mrb[0].mxu0 %v898
    %v1088 = vpop.f32.mrb[0].mxu0
    %v1089 = vadd.f32 0.0, %v1088
    %v1090 = vpop.f32.mrb[0].mxu0
    %1091 = vmatprep.mubr.f32.mxu0 0.0
    %1092 = vmatmul.mubr.f32.gmra.mrb[0].mxu0 %v899
    %v1093 = vpop.f32.mrb[0].mxu0
    %v1094 = vadd.f32 0.0, %v1093
    %v1095 = vpop.f32.mrb[0].mxu0
    %1096 = vmatprep.mubr.f32.mxu0 0.0
    %1097 = vmatmul.mubr.f32.gmra.mrb[0].mxu0 %v900
    %v1098 = vpop.f32.mrb[0].mxu0
    %v1099 = vadd.f32 0.0, %v1098
    %v1100 = vpop.f32.mrb[0].mxu0
    %1101 = vmatprep.mubr.f32.mxu0 0.0
    %1102 = vmatmul.mubr.f32.gmra.mrb[0].mxu0 %v901
    %v1103 = vpop.f32.mrb[0].mxu0
    %v1104 = vadd.f32 0.0, %v1103
    %v1105 = vpop.f32.mrb[0].mxu0
    %1106 = vmatprep.mubr.f32.mxu0 0.0
    %1107 = vmatmul.mubr.f32.gmra.mrb[0].mxu0 %v902
    %v1108 = vpop.f32.mrb[0].mxu0
    %v1109 = vadd.f32 0.0, %v1108
    %v1110 = vpop.f32.mrb[0].mxu0
    %1111 = vmatprep.mubr.f32.mxu0 0.0
    %1112 = vmatmul.mubr.f32.gmra.mrb[0].mxu0 %v903
    %v1113 = vpop.f32.mrb[0].mxu0
    %v1114 = vadd.f32 0.0, %v1113
    %v1115 = vpop.f32.mrb[0].mxu0
    %1116 = vmatprep.mubr.f32.mxu0 0.0
    %1117 = vmatmul.mubr.f32.gmra.mrb[0].mxu0 %v904
    %v1118 = vpop.f32.mrb[0].mxu0
    %v1119 = vadd.f32 0.0, %v1118
    %v1120 = vpop.f32.mrb[0].mxu0
    %1121 = vmatprep.mubr.f32.mxu0 0.0
    %1122 = vmatmul.mubr.f32.gmra.mrb[0].mxu0 %v905
    %v1123 = vpop.f32.mrb[0].mxu0
    %v1124 = vadd.f32 0.0, %v1123
    %v1125 = vpop.f32.mrb[0].mxu0
    %1126 = vmatprep.mubr.f32.mxu0 0.0
    %1127 = vmatmul.mubr.f32.gmra.mrb[0].mxu0 %v906
    %v1128 = vpop.f32.mrb[0].mxu0
    %v1129 = vadd.f32 0.0, %v1128
    %v1130 = vpop.f32.mrb[0].mxu0
    %1131 = vmatprep.mubr.f32.mxu0 0.0
    %1132 = vmatmul.mubr.f32.gmra.mrb[0].mxu0 %v907
    %v1133 = vpop.f32.mrb[0].mxu0
    %v1134 = vadd.f32 0.0, %v1133
    %v1135 = vpop.f32.mrb[0].mxu0
    %1136 = vmatprep.mubr.f32.mxu0 0.0
    %1137 = vmatmul.mubr.f32.gmra.mrb[0].mxu0 %v908
    %v1138 = vpop.f32.mrb[0].mxu0
    %v1139 = vadd.f32 0.0, %v1138
    %v1140 = vpop.f32.mrb[0].mxu0
    %1141 = vmatprep.mubr.f32.mxu0 0.0
    %1142 = vmatmul.mubr.f32.gmra.mrb[0].mxu0 %v909
    %v1143 = vpop.f32.mrb[0].mxu0
    %v1144 = vadd.f32 0.0, %v1143
    %v1145 = vpop.f32.mrb[0].mxu0
    %1146 = vmatprep.mubr.f32.mxu0 0.0
    %1147 = vmatmul.mubr.f32.gmra.mrb[0].mxu0 %v910
    %v1148 = vpop.f32.mrb[0].mxu0
    %v1149 = vadd.f32 0.0, %v1148
    %v1150 = vpop.f32.mrb[0].mxu0
    %1151 = vdwg.mxu0
    %v1152 = vld [vmem:[%s6] sm:$0x1]
    %v1154 = vlaneseq
    %v1155 = vshrl.u32 %v1154, 7
    %v1156 = vsub.s32 0, %v1155
    %v1157 = vrot.slane %v1152, %v1156
    %1159 = vbcast.lane.b32.xlu0 %v1157, 256
    %v1160 = vpop.permute.xlu0 %1159
    %v1162 = vadd.f32 %v994, %v1160
    %v1163 = vadd.f32 %v999, %v1160
    %v1164 = vadd.f32 %v1004, %v1160
    %v1165 = vadd.f32 %v1009, %v1160
    %v1166 = vadd.f32 %v1014, %v1160
    %v1167 = vadd.f32 %v1019, %v1160
    %v1168 = vadd.f32 %v1024, %v1160
    %v1169 = vadd.f32 %v1029, %v1160
    %v1170 = vadd.f32 %v1034, %v1160
    %v1171 = vadd.f32 %v1039, %v1160
    %v1172 = vadd.f32 %v1044, %v1160
    %v1173 = vadd.f32 %v1049, %v1160
    %v1174 = vadd.f32 %v1054, %v1160
    %v1175 = vadd.f32 %v1059, %v1160
    %v1176 = vadd.f32 %v1064, %v1160
    %v1177 = vadd.f32 %v1069, %v1160
    %v1178 = vadd.f32 %v1074, %v1160
    %v1179 = vadd.f32 %v1079, %v1160
    %v1180 = vadd.f32 %v1084, %v1160
    %v1181 = vadd.f32 %v1089, %v1160
    %v1182 = vadd.f32 %v1094, %v1160
    %v1183 = vadd.f32 %v1099, %v1160
    %v1184 = vadd.f32 %v1104, %v1160
    %v1185 = vadd.f32 %v1109, %v1160
    %v1186 = vadd.f32 %v1114, %v1160
    %v1187 = vadd.f32 %v1119, %v1160
    %v1188 = vadd.f32 %v1124, %v1160
    %v1189 = vadd.f32 %v1129, %v1160
    %v1190 = vadd.f32 %v1134, %v1160
    %v1191 = vadd.f32 %v1139, %v1160
    %v1192 = vadd.f32 %v1144, %v1160
    %v1193 = vadd.f32 %v1149, %v1160
    %1226 = vset.pattern.permute.xlu0 0
    %1227 = vperm.xlu0 %1226, %v1162
    %v1228 = vpop.permute.xlu0 %1227
    %1229 = vset.pattern.permute.xlu0 0
    %1230 = vperm.xlu0 %1229, %v1163
    %v1231 = vpop.permute.xlu0 %1230
    %1232 = vset.pattern.permute.xlu0 0
    %1233 = vperm.xlu0 %1232, %v1164
    %v1234 = vpop.permute.xlu0 %1233
    %1235 = vset.pattern.permute.xlu0 0
    %1236 = vperm.xlu0 %1235, %v1165
    %v1237 = vpop.permute.xlu0 %1236
    %1238 = vset.pattern.permute.xlu0 0
    %1239 = vperm.xlu0 %1238, %v1166
    %v1240 = vpop.permute.xlu0 %1239
    %1241 = vset.pattern.permute.xlu0 0
    %1242 = vperm.xlu0 %1241, %v1167
    %v1243 = vpop.permute.xlu0 %1242
    %1244 = vset.pattern.permute.xlu0 0
    %1245 = vperm.xlu0 %1244, %v1168
    %v1246 = vpop.permute.xlu0 %1245
    %1247 = vset.pattern.permute.xlu0 0
    %1248 = vperm.xlu0 %1247, %v1169
    %v1249 = vpop.permute.xlu0 %1248
    %1250 = vset.pattern.permute.xlu0 0
    %1251 = vperm.xlu0 %1250, %v1170
    %v1252 = vpop.permute.xlu0 %1251
    %1253 = vset.pattern.permute.xlu0 0
    %1254 = vperm.xlu0 %1253, %v1171
    %v1255 = vpop.permute.xlu0 %1254
    %1256 = vset.pattern.permute.xlu0 0
    %1257 = vperm.xlu0 %1256, %v1172
    %v1258 = vpop.permute.xlu0 %1257
    %1259 = vset.pattern.permute.xlu0 0
    %1260 = vperm.xlu0 %1259, %v1173
    %v1261 = vpop.permute.xlu0 %1260
    %1262 = vset.pattern.permute.xlu0 0
    %1263 = vperm.xlu0 %1262, %v1174
    %v1264 = vpop.permute.xlu0 %1263
    %1265 = vset.pattern.permute.xlu0 0
    %1266 = vperm.xlu0 %1265, %v1175
    %v1267 = vpop.permute.xlu0 %1266
    %1268 = vset.pattern.permute.xlu0 0
    %1269 = vperm.xlu0 %1268, %v1176
    %v1270 = vpop.permute.xlu0 %1269
    %1271 = vset.pattern.permute.xlu0 0
    %1272 = vperm.xlu0 %1271, %v1177
    %v1273 = vpop.permute.xlu0 %1272
    %1274 = vset.pattern.permute.xlu0 0
    %1275 = vperm.xlu0 %1274, %v1178
    %v1276 = vpop.permute.xlu0 %1275
    %1277 = vset.pattern.permute.xlu0 0
    %1278 = vperm.xlu0 %1277, %v1179
    %v1279 = vpop.permute.xlu0 %1278
    %1280 = vset.pattern.permute.xlu0 0
    %1281 = vperm.xlu0 %1280, %v1180
    %v1282 = vpop.permute.xlu0 %1281
    %1283 = vset.pattern.permute.xlu0 0
    %1284 = vperm.xlu0 %1283, %v1181
    %v1285 = vpop.permute.xlu0 %1284
    %1286 = vset.pattern.permute.xlu0 0
    %1287 = vperm.xlu0 %1286, %v1182
    %v1288 = vpop.permute.xlu0 %1287
    %1289 = vset.pattern.permute.xlu0 0
    %1290 = vperm.xlu0 %1289, %v1183
    %v1291 = vpop.permute.xlu0 %1290
    %1292 = vset.pattern.permute.xlu0 0
    %1293 = vperm.xlu0 %1292, %v1184
    %v1294 = vpop.permute.xlu0 %1293
    %1295 = vset.pattern.permute.xlu0 0
    %1296 = vperm.xlu0 %1295, %v1185
    %v1297 = vpop.permute.xlu0 %1296
    %1298 = vset.pattern.permute.xlu0 0
    %1299 = vperm.xlu0 %1298, %v1186
    %v1300 = vpop.permute.xlu0 %1299
    %1301 = vset.pattern.permute.xlu0 0
    %1302 = vperm.xlu0 %1301, %v1187
    %v1303 = vpop.permute.xlu0 %1302
    %1304 = vset.pattern.permute.xlu0 0
    %1305 = vperm.xlu0 %1304, %v1188
    %v1306 = vpop.permute.xlu0 %1305
    %1307 = vset.pattern.permute.xlu0 0
    %1308 = vperm.xlu0 %1307, %v1189
    %v1309 = vpop.permute.xlu0 %1308
    %1310 = vset.pattern.permute.xlu0 0
    %1311 = vperm.xlu0 %1310, %v1190
    %v1312 = vpop.permute.xlu0 %1311
    %1313 = vset.pattern.permute.xlu0 0
    %1314 = vperm.xlu0 %1313, %v1191
    %v1315 = vpop.permute.xlu0 %1314
    %1316 = vset.pattern.permute.xlu0 0
    %1317 = vperm.xlu0 %1316, %v1192
    %v1318 = vpop.permute.xlu0 %1317
    %1319 = vset.pattern.permute.xlu0 0
    %1320 = vperm.xlu0 %1319, %v1193
    %v1321 = vpop.permute.xlu0 %1320
    %v1322 = vlaneseq
    %v1323 = vand.u32 %v1322, 127
    %v1324 = vlaneseq
    %v1325 = vshrl.u32 %v1324, 7
    %v1326 = vsub.s32 %v1323, %v1325
    %v1327 = vrot.slane %v1228, %v1326
    %v1328 = vlaneseq
    %v1329 = vshrl.u32 %v1328, 7
    %v1330 = vsub.s32 %v1323, %v1329
    %v1331 = vrot.slane %v1231, %v1330
    %v1332 = vlaneseq
    %v1333 = vshrl.u32 %v1332, 7
    %v1334 = vsub.s32 %v1323, %v1333
    %v1335 = vrot.slane %v1234, %v1334
    %v1336 = vlaneseq
    %v1337 = vshrl.u32 %v1336, 7
    %v1338 = vsub.s32 %v1323, %v1337
    %v1339 = vrot.slane %v1237, %v1338
    %v1340 = vlaneseq
    %v1341 = vshrl.u32 %v1340, 7
    %v1342 = vsub.s32 %v1323, %v1341
    %v1343 = vrot.slane %v1240, %v1342
    %v1344 = vlaneseq
    %v1345 = vshrl.u32 %v1344, 7
    %v1346 = vsub.s32 %v1323, %v1345
    %v1347 = vrot.slane %v1243, %v1346
    %v1348 = vlaneseq
    %v1349 = vshrl.u32 %v1348, 7
    %v1350 = vsub.s32 %v1323, %v1349
    %v1351 = vrot.slane %v1246, %v1350
    %v1352 = vlaneseq
    %v1353 = vshrl.u32 %v1352, 7
    %v1354 = vsub.s32 %v1323, %v1353
    %v1355 = vrot.slane %v1249, %v1354
    %v1356 = vlaneseq
    %v1357 = vshrl.u32 %v1356, 7
    %v1358 = vsub.s32 %v1323, %v1357
    %v1359 = vrot.slane %v1252, %v1358
    %v1360 = vlaneseq
    %v1361 = vshrl.u32 %v1360, 7
    %v1362 = vsub.s32 %v1323, %v1361
    %v1363 = vrot.slane %v1255, %v1362
    %v1364 = vlaneseq
    %v1365 = vshrl.u32 %v1364, 7
    %v1366 = vsub.s32 %v1323, %v1365
    %v1367 = vrot.slane %v1258, %v1366
    %v1368 = vlaneseq
    %v1369 = vshrl.u32 %v1368, 7
    %v1370 = vsub.s32 %v1323, %v1369
    %v1371 = vrot.slane %v1261, %v1370
    %v1372 = vlaneseq
    %v1373 = vshrl.u32 %v1372, 7
    %v1374 = vsub.s32 %v1323, %v1373
    %v1375 = vrot.slane %v1264, %v1374
    %v1376 = vlaneseq
    %v1377 = vshrl.u32 %v1376, 7
    %v1378 = vsub.s32 %v1323, %v1377
    %v1379 = vrot.slane %v1267, %v1378
    %v1380 = vlaneseq
    %v1381 = vshrl.u32 %v1380, 7
    %v1382 = vsub.s32 %v1323, %v1381
    %v1383 = vrot.slane %v1270, %v1382
    %v1384 = vlaneseq
    %v1385 = vshrl.u32 %v1384, 7
    %v1386 = vsub.s32 %v1323, %v1385
    %v1387 = vrot.slane %v1273, %v1386
    %v1388 = vlaneseq
    %v1389 = vshrl.u32 %v1388, 7
    %v1390 = vsub.s32 %v1323, %v1389
    %v1391 = vrot.slane %v1276, %v1390
    %v1392 = vlaneseq
    %v1393 = vshrl.u32 %v1392, 7
    %v1394 = vsub.s32 %v1323, %v1393
    %v1395 = vrot.slane %v1279, %v1394
    %v1396 = vlaneseq
    %v1397 = vshrl.u32 %v1396, 7
    %v1398 = vsub.s32 %v1323, %v1397
    %v1399 = vrot.slane %v1282, %v1398
    %v1400 = vlaneseq
    %v1401 = vshrl.u32 %v1400, 7
    %v1402 = vsub.s32 %v1323, %v1401
    %v1403 = vrot.slane %v1285, %v1402
    %v1404 = vlaneseq
    %v1405 = vshrl.u32 %v1404, 7
    %v1406 = vsub.s32 %v1323, %v1405
    %v1407 = vrot.slane %v1288, %v1406
    %v1408 = vlaneseq
    %v1409 = vshrl.u32 %v1408, 7
    %v1410 = vsub.s32 %v1323, %v1409
    %v1411 = vrot.slane %v1291, %v1410
    %v1412 = vlaneseq
    %v1413 = vshrl.u32 %v1412, 7
    %v1414 = vsub.s32 %v1323, %v1413
    %v1415 = vrot.slane %v1294, %v1414
    %v1416 = vlaneseq
    %v1417 = vshrl.u32 %v1416, 7
    %v1418 = vsub.s32 %v1323, %v1417
    %v1419 = vrot.slane %v1297, %v1418
    %v1420 = vlaneseq
    %v1421 = vshrl.u32 %v1420, 7
    %v1422 = vsub.s32 %v1323, %v1421
    %v1423 = vrot.slane %v1300, %v1422
    %v1424 = vlaneseq
    %v1425 = vshrl.u32 %v1424, 7
    %v1426 = vsub.s32 %v1323, %v1425
    %v1427 = vrot.slane %v1303, %v1426
    %v1428 = vlaneseq
    %v1429 = vshrl.u32 %v1428, 7
    %v1430 = vsub.s32 %v1323, %v1429
    %v1431 = vrot.slane %v1306, %v1430
    %v1432 = vlaneseq
    %v1433 = vshrl.u32 %v1432, 7
    %v1434 = vsub.s32 %v1323, %v1433
    %v1435 = vrot.slane %v1309, %v1434
    %v1436 = vlaneseq
    %v1437 = vshrl.u32 %v1436, 7
    %v1438 = vsub.s32 %v1323, %v1437
    %v1439 = vrot.slane %v1312, %v1438
    %v1440 = vlaneseq
    %v1441 = vshrl.u32 %v1440, 7
    %v1442 = vsub.s32 %v1323, %v1441
    %v1443 = vrot.slane %v1315, %v1442
    %v1444 = vlaneseq
    %v1445 = vshrl.u32 %v1444, 7
    %v1446 = vsub.s32 %v1323, %v1445
    %v1447 = vrot.slane %v1318, %v1446
    %v1448 = vlaneseq
    %v1449 = vshrl.u32 %v1448, 7
    %v1450 = vsub.s32 %v1323, %v1449
    %v1451 = vrot.slane %v1321, %v1450
    %vm1452 = vcmask 1041409
    %v1453 = vsel %vm1452, %v1331, %v1327
    %vm1454 = vcmask 1042434
    %v1455 = vsel %vm1454, %v1335, %v1453
    %vm1456 = vcmask 1043459
    %v1457 = vsel %vm1456, %v1339, %v1455
    %vm1458 = vcmask 1044484
    %v1459 = vsel %vm1458, %v1343, %v1457
    %vm1460 = vcmask 1045509
    %v1461 = vsel %vm1460, %v1347, %v1459
    %vm1462 = vcmask 1046534
    %v1463 = vsel %vm1462, %v1351, %v1461
    %vm1464 = vcmask 1047559
    %v1465 = vsel %vm1464, %v1355, %v1463
    %v1466 = vsel %vm1452, %v1363, %v1359
    %v1467 = vsel %vm1454, %v1367, %v1466
    %v1468 = vsel %vm1456, %v1371, %v1467
    %v1469 = vsel %vm1458, %v1375, %v1468
    %v1470 = vsel %vm1460, %v1379, %v1469
    %v1471 = vsel %vm1462, %v1383, %v1470
    %v1472 = vsel %vm1464, %v1387, %v1471
    %v1473 = vsel %vm1452, %v1395, %v1391
    %v1474 = vsel %vm1454, %v1399, %v1473
    %v1475 = vsel %vm1456, %v1403, %v1474
    %v1476 = vsel %vm1458, %v1407, %v1475
    %v1477 = vsel %vm1460, %v1411, %v1476
    %v1478 = vsel %vm1462, %v1415, %v1477
    %v1479 = vsel %vm1464, %v1419, %v1478
    %v1480 = vsel %vm1452, %v1427, %v1423
    %v1481 = vsel %vm1454, %v1431, %v1480
    %v1482 = vsel %vm1456, %v1435, %v1481
    %v1483 = vsel %vm1458, %v1439, %v1482
    %v1484 = vsel %vm1460, %v1443, %v1483
    %v1485 = vsel %vm1462, %v1447, %v1484
    %v1486 = vsel %vm1464, %v1451, %v1485
    %vm1491 = vcmask 64512
    %v1492 = vsel %vm1491, %v1465, -inf
    %1493 = vmax.xlane.f32.xlu0 %v1492
    %v1494 = vpop.xlane.xlu0 %1493
    %v1495 = vsel %vm1491, %v1472, -inf
    %1496 = vmax.xlane.f32.xlu0 %v1495
    %v1497 = vpop.xlane.xlu0 %1496
    %v1498 = vsel %vm1491, %v1479, -inf
    %1499 = vmax.xlane.f32.xlu0 %v1498
    %v1500 = vpop.xlane.xlu0 %1499
    %v1501 = vsel %vm1491, %v1486, -inf
    %1502 = vmax.xlane.f32.xlu0 %v1501
    %v1503 = vpop.xlane.xlu0 %1502
    %v1508 = vlaneseq
    %v1509 = vshrl.u32 %v1508, 7
    %v1510 = vsub.s32 0, %v1509
    %v1511 = vrot.slane %v1494, %v1510
    %v1512 = vlaneseq
    %v1513 = vshrl.u32 %v1512, 7
    %v1514 = vsub.s32 1, %v1513
    %v1515 = vrot.slane %v1494, %v1514
    %v1516 = vlaneseq
    %v1517 = vshrl.u32 %v1516, 7
    %v1518 = vsub.s32 2, %v1517
    %v1519 = vrot.slane %v1494, %v1518
    %v1520 = vlaneseq
    %v1521 = vshrl.u32 %v1520, 7
    %v1522 = vsub.s32 3, %v1521
    %v1523 = vrot.slane %v1494, %v1522
    %v1524 = vlaneseq
    %v1525 = vshrl.u32 %v1524, 7
    %v1526 = vsub.s32 4, %v1525
    %v1527 = vrot.slane %v1494, %v1526
    %v1528 = vlaneseq
    %v1529 = vshrl.u32 %v1528, 7
    %v1530 = vsub.s32 5, %v1529
    %v1531 = vrot.slane %v1494, %v1530
    %v1532 = vlaneseq
    %v1533 = vshrl.u32 %v1532, 7
    %v1534 = vsub.s32 6, %v1533
    %v1535 = vrot.slane %v1494, %v1534
    %v1536 = vlaneseq
    %v1537 = vshrl.u32 %v1536, 7
    %v1538 = vsub.s32 7, %v1537
    %v1539 = vrot.slane %v1494, %v1538
    %v1540 = vlaneseq
    %v1541 = vshrl.u32 %v1540, 7
    %v1542 = vsub.s32 0, %v1541
    %v1543 = vrot.slane %v1497, %v1542
    %v1544 = vlaneseq
    %v1545 = vshrl.u32 %v1544, 7
    %v1546 = vsub.s32 1, %v1545
    %v1547 = vrot.slane %v1497, %v1546
    %v1548 = vlaneseq
    %v1549 = vshrl.u32 %v1548, 7
    %v1550 = vsub.s32 2, %v1549
    %v1551 = vrot.slane %v1497, %v1550
    %v1552 = vlaneseq
    %v1553 = vshrl.u32 %v1552, 7
    %v1554 = vsub.s32 3, %v1553
    %v1555 = vrot.slane %v1497, %v1554
    %v1556 = vlaneseq
    %v1557 = vshrl.u32 %v1556, 7
    %v1558 = vsub.s32 4, %v1557
    %v1559 = vrot.slane %v1497, %v1558
    %v1560 = vlaneseq
    %v1561 = vshrl.u32 %v1560, 7
    %v1562 = vsub.s32 5, %v1561
    %v1563 = vrot.slane %v1497, %v1562
    %v1564 = vlaneseq
    %v1565 = vshrl.u32 %v1564, 7
    %v1566 = vsub.s32 6, %v1565
    %v1567 = vrot.slane %v1497, %v1566
    %v1568 = vlaneseq
    %v1569 = vshrl.u32 %v1568, 7
    %v1570 = vsub.s32 7, %v1569
    %v1571 = vrot.slane %v1497, %v1570
    %v1572 = vlaneseq
    %v1573 = vshrl.u32 %v1572, 7
    %v1574 = vsub.s32 0, %v1573
    %v1575 = vrot.slane %v1500, %v1574
    %v1576 = vlaneseq
    %v1577 = vshrl.u32 %v1576, 7
    %v1578 = vsub.s32 1, %v1577
    %v1579 = vrot.slane %v1500, %v1578
    %v1580 = vlaneseq
    %v1581 = vshrl.u32 %v1580, 7
    %v1582 = vsub.s32 2, %v1581
    %v1583 = vrot.slane %v1500, %v1582
    %v1584 = vlaneseq
    %v1585 = vshrl.u32 %v1584, 7
    %v1586 = vsub.s32 3, %v1585
    %v1587 = vrot.slane %v1500, %v1586
    %v1588 = vlaneseq
    %v1589 = vshrl.u32 %v1588, 7
    %v1590 = vsub.s32 4, %v1589
    %v1591 = vrot.slane %v1500, %v1590
    %v1592 = vlaneseq
    %v1593 = vshrl.u32 %v1592, 7
    %v1594 = vsub.s32 5, %v1593
    %v1595 = vrot.slane %v1500, %v1594
    %v1596 = vlaneseq
    %v1597 = vshrl.u32 %v1596, 7
    %v1598 = vsub.s32 6, %v1597
    %v1599 = vrot.slane %v1500, %v1598
    %v1600 = vlaneseq
    %v1601 = vshrl.u32 %v1600, 7
    %v1602 = vsub.s32 7, %v1601
    %v1603 = vrot.slane %v1500, %v1602
    %v1604 = vlaneseq
    %v1605 = vshrl.u32 %v1604, 7
    %v1606 = vsub.s32 0, %v1605
    %v1607 = vrot.slane %v1503, %v1606
    %v1608 = vlaneseq
    %v1609 = vshrl.u32 %v1608, 7
    %v1610 = vsub.s32 1, %v1609
    %v1611 = vrot.slane %v1503, %v1610
    %v1612 = vlaneseq
    %v1613 = vshrl.u32 %v1612, 7
    %v1614 = vsub.s32 2, %v1613
    %v1615 = vrot.slane %v1503, %v1614
    %v1616 = vlaneseq
    %v1617 = vshrl.u32 %v1616, 7
    %v1618 = vsub.s32 3, %v1617
    %v1619 = vrot.slane %v1503, %v1618
    %v1620 = vlaneseq
    %v1621 = vshrl.u32 %v1620, 7
    %v1622 = vsub.s32 4, %v1621
    %v1623 = vrot.slane %v1503, %v1622
    %v1624 = vlaneseq
    %v1625 = vshrl.u32 %v1624, 7
    %v1626 = vsub.s32 5, %v1625
    %v1627 = vrot.slane %v1503, %v1626
    %v1628 = vlaneseq
    %v1629 = vshrl.u32 %v1628, 7
    %v1630 = vsub.s32 6, %v1629
    %v1631 = vrot.slane %v1503, %v1630
    %v1632 = vlaneseq
    %v1633 = vshrl.u32 %v1632, 7
    %v1634 = vsub.s32 7, %v1633
    %v1635 = vrot.slane %v1503, %v1634
    %v1668 = vsub.f32 %v1162, %v1511
    %v1669 = vsub.f32 %v1163, %v1515
    %v1670 = vsub.f32 %v1164, %v1519
    %v1671 = vsub.f32 %v1165, %v1523
    %v1672 = vsub.f32 %v1166, %v1527
    %v1673 = vsub.f32 %v1167, %v1531
    %v1674 = vsub.f32 %v1168, %v1535
    %v1675 = vsub.f32 %v1169, %v1539
    %v1676 = vsub.f32 %v1170, %v1543
    %v1677 = vsub.f32 %v1171, %v1547
    %v1678 = vsub.f32 %v1172, %v1551
    %v1679 = vsub.f32 %v1173, %v1555
    %v1680 = vsub.f32 %v1174, %v1559
    %v1681 = vsub.f32 %v1175, %v1563
    %v1682 = vsub.f32 %v1176, %v1567
    %v1683 = vsub.f32 %v1177, %v1571
    %v1684 = vsub.f32 %v1178, %v1575
    %v1685 = vsub.f32 %v1179, %v1579
    %v1686 = vsub.f32 %v1180, %v1583
    %v1687 = vsub.f32 %v1181, %v1587
    %v1688 = vsub.f32 %v1182, %v1591
    %v1689 = vsub.f32 %v1183, %v1595
    %v1690 = vsub.f32 %v1184, %v1599
    %v1691 = vsub.f32 %v1185, %v1603
    %v1692 = vsub.f32 %v1186, %v1607
    %v1693 = vsub.f32 %v1187, %v1611
    %v1694 = vsub.f32 %v1188, %v1615
    %v1695 = vsub.f32 %v1189, %v1619
    %v1696 = vsub.f32 %v1190, %v1623
    %v1697 = vsub.f32 %v1191, %v1627
    %v1698 = vsub.f32 %v1192, %v1631
    %v1699 = vsub.f32 %v1193, %v1635
    %v1700 = vmul.f32 %v1668, 1.442695
    %v1701 = vpow.pop %v1700
    %v1702 = vmul.f32 %v1669, 1.442695
    %v1703 = vpow.pop %v1702
    %v1704 = vmul.f32 %v1670, 1.442695
    %v1705 = vpow.pop %v1704
    %v1706 = vmul.f32 %v1671, 1.442695
    %v1707 = vpow.pop %v1706
    %v1708 = vmul.f32 %v1672, 1.442695
    %v1709 = vpow.pop %v1708
    %v1710 = vmul.f32 %v1673, 1.442695
    %v1711 = vpow.pop %v1710
    %v1712 = vmul.f32 %v1674, 1.442695
    %v1713 = vpow.pop %v1712
    %v1714 = vmul.f32 %v1675, 1.442695
    %v1715 = vpow.pop %v1714
    %v1716 = vmul.f32 %v1676, 1.442695
    %v1717 = vpow.pop %v1716
    %v1718 = vmul.f32 %v1677, 1.442695
    %v1719 = vpow.pop %v1718
    %v1720 = vmul.f32 %v1678, 1.442695
    %v1721 = vpow.pop %v1720
    %v1722 = vmul.f32 %v1679, 1.442695
    %v1723 = vpow.pop %v1722
    %v1724 = vmul.f32 %v1680, 1.442695
    %v1725 = vpow.pop %v1724
    %v1726 = vmul.f32 %v1681, 1.442695
    %v1727 = vpow.pop %v1726
    %v1728 = vmul.f32 %v1682, 1.442695
    %v1729 = vpow.pop %v1728
    %v1730 = vmul.f32 %v1683, 1.442695
    %v1731 = vpow.pop %v1730
    %v1732 = vmul.f32 %v1684, 1.442695
    %v1733 = vpow.pop %v1732
    %v1734 = vmul.f32 %v1685, 1.442695
    %v1735 = vpow.pop %v1734
    %v1736 = vmul.f32 %v1686, 1.442695
    %v1737 = vpow.pop %v1736
    %v1738 = vmul.f32 %v1687, 1.442695
    %v1739 = vpow.pop %v1738
    %v1740 = vmul.f32 %v1688, 1.442695
    %v1741 = vpow.pop %v1740
    %v1742 = vmul.f32 %v1689, 1.442695
    %v1743 = vpow.pop %v1742
    %v1744 = vmul.f32 %v1690, 1.442695
    %v1745 = vpow.pop %v1744
    %v1746 = vmul.f32 %v1691, 1.442695
    %v1747 = vpow.pop %v1746
    %v1748 = vmul.f32 %v1692, 1.442695
    %v1749 = vpow.pop %v1748
    %v1750 = vmul.f32 %v1693, 1.442695
    %v1751 = vpow.pop %v1750
    %v1752 = vmul.f32 %v1694, 1.442695
    %v1753 = vpow.pop %v1752
    %v1754 = vmul.f32 %v1695, 1.442695
    %v1755 = vpow.pop %v1754
    %v1756 = vmul.f32 %v1696, 1.442695
    %v1757 = vpow.pop %v1756
    %v1758 = vmul.f32 %v1697, 1.442695
    %v1759 = vpow.pop %v1758
    %v1760 = vmul.f32 %v1698, 1.442695
    %v1761 = vpow.pop %v1760
    %v1762 = vmul.f32 %v1699, 1.442695
    %v1763 = vpow.pop %v1762
    %1796 = vset.pattern.permute.xlu0 0
    %1797 = vperm.xlu0 %1796, %v1701
    %v1798 = vpop.permute.xlu0 %1797
    %1799 = vset.pattern.permute.xlu0 0
    %1800 = vperm.xlu0 %1799, %v1703
    %v1801 = vpop.permute.xlu0 %1800
    %1802 = vset.pattern.permute.xlu0 0
    %1803 = vperm.xlu0 %1802, %v1705
    %v1804 = vpop.permute.xlu0 %1803
    %1805 = vset.pattern.permute.xlu0 0
    %1806 = vperm.xlu0 %1805, %v1707
    %v1807 = vpop.permute.xlu0 %1806
    %1808 = vset.pattern.permute.xlu0 0
    %1809 = vperm.xlu0 %1808, %v1709
    %v1810 = vpop.permute.xlu0 %1809
    %1811 = vset.pattern.permute.xlu0 0
    %1812 = vperm.xlu0 %1811, %v1711
    %v1813 = vpop.permute.xlu0 %1812
    %1814 = vset.pattern.permute.xlu0 0
    %1815 = vperm.xlu0 %1814, %v1713
    %v1816 = vpop.permute.xlu0 %1815
    %1817 = vset.pattern.permute.xlu0 0
    %1818 = vperm.xlu0 %1817, %v1715
    %v1819 = vpop.permute.xlu0 %1818
    %1820 = vset.pattern.permute.xlu0 0
    %1821 = vperm.xlu0 %1820, %v1717
    %v1822 = vpop.permute.xlu0 %1821
    %1823 = vset.pattern.permute.xlu0 0
    %1824 = vperm.xlu0 %1823, %v1719
    %v1825 = vpop.permute.xlu0 %1824
    %1826 = vset.pattern.permute.xlu0 0
    %1827 = vperm.xlu0 %1826, %v1721
    %v1828 = vpop.permute.xlu0 %1827
    %1829 = vset.pattern.permute.xlu0 0
    %1830 = vperm.xlu0 %1829, %v1723
    %v1831 = vpop.permute.xlu0 %1830
    %1832 = vset.pattern.permute.xlu0 0
    %1833 = vperm.xlu0 %1832, %v1725
    %v1834 = vpop.permute.xlu0 %1833
    %1835 = vset.pattern.permute.xlu0 0
    %1836 = vperm.xlu0 %1835, %v1727
    %v1837 = vpop.permute.xlu0 %1836
    %1838 = vset.pattern.permute.xlu0 0
    %1839 = vperm.xlu0 %1838, %v1729
    %v1840 = vpop.permute.xlu0 %1839
    %1841 = vset.pattern.permute.xlu0 0
    %1842 = vperm.xlu0 %1841, %v1731
    %v1843 = vpop.permute.xlu0 %1842
    %1844 = vset.pattern.permute.xlu0 0
    %1845 = vperm.xlu0 %1844, %v1733
    %v1846 = vpop.permute.xlu0 %1845
    %1847 = vset.pattern.permute.xlu0 0
    %1848 = vperm.xlu0 %1847, %v1735
    %v1849 = vpop.permute.xlu0 %1848
    %1850 = vset.pattern.permute.xlu0 0
    %1851 = vperm.xlu0 %1850, %v1737
    %v1852 = vpop.permute.xlu0 %1851
    %1853 = vset.pattern.permute.xlu0 0
    %1854 = vperm.xlu0 %1853, %v1739
    %v1855 = vpop.permute.xlu0 %1854
    %1856 = vset.pattern.permute.xlu0 0
    %1857 = vperm.xlu0 %1856, %v1741
    %v1858 = vpop.permute.xlu0 %1857
    %1859 = vset.pattern.permute.xlu0 0
    %1860 = vperm.xlu0 %1859, %v1743
    %v1861 = vpop.permute.xlu0 %1860
    %1862 = vset.pattern.permute.xlu0 0
    %1863 = vperm.xlu0 %1862, %v1745
    %v1864 = vpop.permute.xlu0 %1863
    %1865 = vset.pattern.permute.xlu0 0
    %1866 = vperm.xlu0 %1865, %v1747
    %v1867 = vpop.permute.xlu0 %1866
    %1868 = vset.pattern.permute.xlu0 0
    %1869 = vperm.xlu0 %1868, %v1749
    %v1870 = vpop.permute.xlu0 %1869
    %1871 = vset.pattern.permute.xlu0 0
    %1872 = vperm.xlu0 %1871, %v1751
    %v1873 = vpop.permute.xlu0 %1872
    %1874 = vset.pattern.permute.xlu0 0
    %1875 = vperm.xlu0 %1874, %v1753
    %v1876 = vpop.permute.xlu0 %1875
    %1877 = vset.pattern.permute.xlu0 0
    %1878 = vperm.xlu0 %1877, %v1755
    %v1879 = vpop.permute.xlu0 %1878
    %1880 = vset.pattern.permute.xlu0 0
    %1881 = vperm.xlu0 %1880, %v1757
    %v1882 = vpop.permute.xlu0 %1881
    %1883 = vset.pattern.permute.xlu0 0
    %1884 = vperm.xlu0 %1883, %v1759
    %v1885 = vpop.permute.xlu0 %1884
    %1886 = vset.pattern.permute.xlu0 0
    %1887 = vperm.xlu0 %1886, %v1761
    %v1888 = vpop.permute.xlu0 %1887
    %1889 = vset.pattern.permute.xlu0 0
    %1890 = vperm.xlu0 %1889, %v1763
    %v1891 = vpop.permute.xlu0 %1890
    %v1892 = vlaneseq
    %v1893 = vshrl.u32 %v1892, 7
    %v1894 = vsub.s32 %v1323, %v1893
    %v1895 = vrot.slane %v1798, %v1894
    %v1896 = vlaneseq
    %v1897 = vshrl.u32 %v1896, 7
    %v1898 = vsub.s32 %v1323, %v1897
    %v1899 = vrot.slane %v1801, %v1898
    %v1900 = vlaneseq
    %v1901 = vshrl.u32 %v1900, 7
    %v1902 = vsub.s32 %v1323, %v1901
    %v1903 = vrot.slane %v1804, %v1902
    %v1904 = vlaneseq
    %v1905 = vshrl.u32 %v1904, 7
    %v1906 = vsub.s32 %v1323, %v1905
    %v1907 = vrot.slane %v1807, %v1906
    %v1908 = vlaneseq
    %v1909 = vshrl.u32 %v1908, 7
    %v1910 = vsub.s32 %v1323, %v1909
    %v1911 = vrot.slane %v1810, %v1910
    %v1912 = vlaneseq
    %v1913 = vshrl.u32 %v1912, 7
    %v1914 = vsub.s32 %v1323, %v1913
    %v1915 = vrot.slane %v1813, %v1914
    %v1916 = vlaneseq
    %v1917 = vshrl.u32 %v1916, 7
    %v1918 = vsub.s32 %v1323, %v1917
    %v1919 = vrot.slane %v1816, %v1918
    %v1920 = vlaneseq
    %v1921 = vshrl.u32 %v1920, 7
    %v1922 = vsub.s32 %v1323, %v1921
    %v1923 = vrot.slane %v1819, %v1922
    %v1924 = vlaneseq
    %v1925 = vshrl.u32 %v1924, 7
    %v1926 = vsub.s32 %v1323, %v1925
    %v1927 = vrot.slane %v1822, %v1926
    %v1928 = vlaneseq
    %v1929 = vshrl.u32 %v1928, 7
    %v1930 = vsub.s32 %v1323, %v1929
    %v1931 = vrot.slane %v1825, %v1930
    %v1932 = vlaneseq
    %v1933 = vshrl.u32 %v1932, 7
    %v1934 = vsub.s32 %v1323, %v1933
    %v1935 = vrot.slane %v1828, %v1934
    %v1936 = vlaneseq
    %v1937 = vshrl.u32 %v1936, 7
    %v1938 = vsub.s32 %v1323, %v1937
    %v1939 = vrot.slane %v1831, %v1938
    %v1940 = vlaneseq
    %v1941 = vshrl.u32 %v1940, 7
    %v1942 = vsub.s32 %v1323, %v1941
    %v1943 = vrot.slane %v1834, %v1942
    %v1944 = vlaneseq
    %v1945 = vshrl.u32 %v1944, 7
    %v1946 = vsub.s32 %v1323, %v1945
    %v1947 = vrot.slane %v1837, %v1946
    %v1948 = vlaneseq
    %v1949 = vshrl.u32 %v1948, 7
    %v1950 = vsub.s32 %v1323, %v1949
    %v1951 = vrot.slane %v1840, %v1950
    %v1952 = vlaneseq
    %v1953 = vshrl.u32 %v1952, 7
    %v1954 = vsub.s32 %v1323, %v1953
    %v1955 = vrot.slane %v1843, %v1954
    %v1956 = vlaneseq
    %v1957 = vshrl.u32 %v1956, 7
    %v1958 = vsub.s32 %v1323, %v1957
    %v1959 = vrot.slane %v1846, %v1958
    %v1960 = vlaneseq
    %v1961 = vshrl.u32 %v1960, 7
    %v1962 = vsub.s32 %v1323, %v1961
    %v1963 = vrot.slane %v1849, %v1962
    %v1964 = vlaneseq
    %v1965 = vshrl.u32 %v1964, 7
    %v1966 = vsub.s32 %v1323, %v1965
    %v1967 = vrot.slane %v1852, %v1966
    %v1968 = vlaneseq
    %v1969 = vshrl.u32 %v1968, 7
    %v1970 = vsub.s32 %v1323, %v1969
    %v1971 = vrot.slane %v1855, %v1970
    %v1972 = vlaneseq
    %v1973 = vshrl.u32 %v1972, 7
    %v1974 = vsub.s32 %v1323, %v1973
    %v1975 = vrot.slane %v1858, %v1974
    %v1976 = vlaneseq
    %v1977 = vshrl.u32 %v1976, 7
    %v1978 = vsub.s32 %v1323, %v1977
    %v1979 = vrot.slane %v1861, %v1978
    %v1980 = vlaneseq
    %v1981 = vshrl.u32 %v1980, 7
    %v1982 = vsub.s32 %v1323, %v1981
    %v1983 = vrot.slane %v1864, %v1982
    %v1984 = vlaneseq
    %v1985 = vshrl.u32 %v1984, 7
    %v1986 = vsub.s32 %v1323, %v1985
    %v1987 = vrot.slane %v1867, %v1986
    %v1988 = vlaneseq
    %v1989 = vshrl.u32 %v1988, 7
    %v1990 = vsub.s32 %v1323, %v1989
    %v1991 = vrot.slane %v1870, %v1990
    %v1992 = vlaneseq
    %v1993 = vshrl.u32 %v1992, 7
    %v1994 = vsub.s32 %v1323, %v1993
    %v1995 = vrot.slane %v1873, %v1994
    %v1996 = vlaneseq
    %v1997 = vshrl.u32 %v1996, 7
    %v1998 = vsub.s32 %v1323, %v1997
    %v1999 = vrot.slane %v1876, %v1998
    %v2000 = vlaneseq
    %v2001 = vshrl.u32 %v2000, 7
    %v2002 = vsub.s32 %v1323, %v2001
    %v2003 = vrot.slane %v1879, %v2002
    %v2004 = vlaneseq
    %v2005 = vshrl.u32 %v2004, 7
    %v2006 = vsub.s32 %v1323, %v2005
    %v2007 = vrot.slane %v1882, %v2006
    %v2008 = vlaneseq
    %v2009 = vshrl.u32 %v2008, 7
    %v2010 = vsub.s32 %v1323, %v2009
    %v2011 = vrot.slane %v1885, %v2010
    %v2012 = vlaneseq
    %v2013 = vshrl.u32 %v2012, 7
    %v2014 = vsub.s32 %v1323, %v2013
    %v2015 = vrot.slane %v1888, %v2014
    %v2016 = vlaneseq
    %v2017 = vshrl.u32 %v2016, 7
    %v2018 = vsub.s32 %v1323, %v2017
    %v2019 = vrot.slane %v1891, %v2018
    %v2020 = vsel %vm1452, %v1899, %v1895
    %v2021 = vsel %vm1454, %v1903, %v2020
    %v2022 = vsel %vm1456, %v1907, %v2021
    %v2023 = vsel %vm1458, %v1911, %v2022
    %v2024 = vsel %vm1460, %v1915, %v2023
    %v2025 = vsel %vm1462, %v1919, %v2024
    %v2026 = vsel %vm1464, %v1923, %v2025
    %v2027 = vsel %vm1452, %v1931, %v1927
    %v2028 = vsel %vm1454, %v1935, %v2027
    %v2029 = vsel %vm1456, %v1939, %v2028
    %v2030 = vsel %vm1458, %v1943, %v2029
    %v2031 = vsel %vm1460, %v1947, %v2030
    %v2032 = vsel %vm1462, %v1951, %v2031
    %v2033 = vsel %vm1464, %v1955, %v2032
    %v2034 = vsel %vm1452, %v1963, %v1959
    %v2035 = vsel %vm1454, %v1967, %v2034
    %v2036 = vsel %vm1456, %v1971, %v2035
    %v2037 = vsel %vm1458, %v1975, %v2036
    %v2038 = vsel %vm1460, %v1979, %v2037
    %v2039 = vsel %vm1462, %v1983, %v2038
    %v2040 = vsel %vm1464, %v1987, %v2039
    %v2041 = vsel %vm1452, %v1995, %v1991
    %v2042 = vsel %vm1454, %v1999, %v2041
    %v2043 = vsel %vm1456, %v2003, %v2042
    %v2044 = vsel %vm1458, %v2007, %v2043
    %v2045 = vsel %vm1460, %v2011, %v2044
    %v2046 = vsel %vm1462, %v2015, %v2045
    %v2047 = vsel %vm1464, %v2019, %v2046
    %v2052 = vsel %vm1491, %v2026, 0.0
    %2053 = vadd.xlane.f32.xlu0 %v2052
    %v2054 = vpop.xlane.xlu0 %2053
    %v2055 = vsel %vm1491, %v2033, 0.0
    %2056 = vadd.xlane.f32.xlu0 %v2055
    %v2057 = vpop.xlane.xlu0 %2056
    %v2058 = vsel %vm1491, %v2040, 0.0
    %2059 = vadd.xlane.f32.xlu0 %v2058
    %v2060 = vpop.xlane.xlu0 %2059
    %v2061 = vsel %vm1491, %v2047, 0.0
    %2062 = vadd.xlane.f32.xlu0 %v2061
    %v2063 = vpop.xlane.xlu0 %2062
    %v2068 = vlaneseq
    %v2069 = vshrl.u32 %v2068, 7
    %v2070 = vsub.s32 0, %v2069
    %v2071 = vrot.slane %v2054, %v2070
    %v2072 = vlaneseq
    %v2073 = vshrl.u32 %v2072, 7
    %v2074 = vsub.s32 1, %v2073
    %v2075 = vrot.slane %v2054, %v2074
    %v2076 = vlaneseq
    %v2077 = vshrl.u32 %v2076, 7
    %v2078 = vsub.s32 2, %v2077
    %v2079 = vrot.slane %v2054, %v2078
    %v2080 = vlaneseq
    %v2081 = vshrl.u32 %v2080, 7
    %v2082 = vsub.s32 3, %v2081
    %v2083 = vrot.slane %v2054, %v2082
    %v2084 = vlaneseq
    %v2085 = vshrl.u32 %v2084, 7
    %v2086 = vsub.s32 4, %v2085
    %v2087 = vrot.slane %v2054, %v2086
    %v2088 = vlaneseq
    %v2089 = vshrl.u32 %v2088, 7
    %v2090 = vsub.s32 5, %v2089
    %v2091 = vrot.slane %v2054, %v2090
    %v2092 = vlaneseq
    %v2093 = vshrl.u32 %v2092, 7
    %v2094 = vsub.s32 6, %v2093
    %v2095 = vrot.slane %v2054, %v2094
    %v2096 = vlaneseq
    %v2097 = vshrl.u32 %v2096, 7
    %v2098 = vsub.s32 7, %v2097
    %v2099 = vrot.slane %v2054, %v2098
    %v2100 = vlaneseq
    %v2101 = vshrl.u32 %v2100, 7
    %v2102 = vsub.s32 0, %v2101
    %v2103 = vrot.slane %v2057, %v2102
    %v2104 = vlaneseq
    %v2105 = vshrl.u32 %v2104, 7
    %v2106 = vsub.s32 1, %v2105
    %v2107 = vrot.slane %v2057, %v2106
    %v2108 = vlaneseq
    %v2109 = vshrl.u32 %v2108, 7
    %v2110 = vsub.s32 2, %v2109
    %v2111 = vrot.slane %v2057, %v2110
    %v2112 = vlaneseq
    %v2113 = vshrl.u32 %v2112, 7
    %v2114 = vsub.s32 3, %v2113
    %v2115 = vrot.slane %v2057, %v2114
    %v2116 = vlaneseq
    %v2117 = vshrl.u32 %v2116, 7
    %v2118 = vsub.s32 4, %v2117
    %v2119 = vrot.slane %v2057, %v2118
    %v2120 = vlaneseq
    %v2121 = vshrl.u32 %v2120, 7
    %v2122 = vsub.s32 5, %v2121
    %v2123 = vrot.slane %v2057, %v2122
    %v2124 = vlaneseq
    %v2125 = vshrl.u32 %v2124, 7
    %v2126 = vsub.s32 6, %v2125
    %v2127 = vrot.slane %v2057, %v2126
    %v2128 = vlaneseq
    %v2129 = vshrl.u32 %v2128, 7
    %v2130 = vsub.s32 7, %v2129
    %v2131 = vrot.slane %v2057, %v2130
    %v2132 = vlaneseq
    %v2133 = vshrl.u32 %v2132, 7
    %v2134 = vsub.s32 0, %v2133
    %v2135 = vrot.slane %v2060, %v2134
    %v2136 = vlaneseq
    %v2137 = vshrl.u32 %v2136, 7
    %v2138 = vsub.s32 1, %v2137
    %v2139 = vrot.slane %v2060, %v2138
    %v2140 = vlaneseq
    %v2141 = vshrl.u32 %v2140, 7
    %v2142 = vsub.s32 2, %v2141
    %v2143 = vrot.slane %v2060, %v2142
    %v2144 = vlaneseq
    %v2145 = vshrl.u32 %v2144, 7
    %v2146 = vsub.s32 3, %v2145
    %v2147 = vrot.slane %v2060, %v2146
    %v2148 = vlaneseq
    %v2149 = vshrl.u32 %v2148, 7
    %v2150 = vsub.s32 4, %v2149
    %v2151 = vrot.slane %v2060, %v2150
    %v2152 = vlaneseq
    %v2153 = vshrl.u32 %v2152, 7
    %v2154 = vsub.s32 5, %v2153
    %v2155 = vrot.slane %v2060, %v2154
    %v2156 = vlaneseq
    %v2157 = vshrl.u32 %v2156, 7
    %v2158 = vsub.s32 6, %v2157
    %v2159 = vrot.slane %v2060, %v2158
    %v2160 = vlaneseq
    %v2161 = vshrl.u32 %v2160, 7
    %v2162 = vsub.s32 7, %v2161
    %v2163 = vrot.slane %v2060, %v2162
    %v2164 = vlaneseq
    %v2165 = vshrl.u32 %v2164, 7
    %v2166 = vsub.s32 0, %v2165
    %v2167 = vrot.slane %v2063, %v2166
    %v2168 = vlaneseq
    %v2169 = vshrl.u32 %v2168, 7
    %v2170 = vsub.s32 1, %v2169
    %v2171 = vrot.slane %v2063, %v2170
    %v2172 = vlaneseq
    %v2173 = vshrl.u32 %v2172, 7
    %v2174 = vsub.s32 2, %v2173
    %v2175 = vrot.slane %v2063, %v2174
    %v2176 = vlaneseq
    %v2177 = vshrl.u32 %v2176, 7
    %v2178 = vsub.s32 3, %v2177
    %v2179 = vrot.slane %v2063, %v2178
    %v2180 = vlaneseq
    %v2181 = vshrl.u32 %v2180, 7
    %v2182 = vsub.s32 4, %v2181
    %v2183 = vrot.slane %v2063, %v2182
    %v2184 = vlaneseq
    %v2185 = vshrl.u32 %v2184, 7
    %v2186 = vsub.s32 5, %v2185
    %v2187 = vrot.slane %v2063, %v2186
    %v2188 = vlaneseq
    %v2189 = vshrl.u32 %v2188, 7
    %v2190 = vsub.s32 6, %v2189
    %v2191 = vrot.slane %v2063, %v2190
    %v2192 = vlaneseq
    %v2193 = vshrl.u32 %v2192, 7
    %v2194 = vsub.s32 7, %v2193
    %v2195 = vrot.slane %v2063, %v2194
    %v2228 = vrcp.pop %v2071
    %v2229 = vmul.f32 %v1701, %v2228
    %v2230 = vrcp.pop %v2075
    %v2231 = vmul.f32 %v1703, %v2230
    %v2232 = vrcp.pop %v2079
    %v2233 = vmul.f32 %v1705, %v2232
    %v2234 = vrcp.pop %v2083
    %v2235 = vmul.f32 %v1707, %v2234
    %v2236 = vrcp.pop %v2087
    %v2237 = vmul.f32 %v1709, %v2236
    %v2238 = vrcp.pop %v2091
    %v2239 = vmul.f32 %v1711, %v2238
    %v2240 = vrcp.pop %v2095
    %v2241 = vmul.f32 %v1713, %v2240
    %v2242 = vrcp.pop %v2099
    %v2243 = vmul.f32 %v1715, %v2242
    %v2244 = vrcp.pop %v2103
    %v2245 = vmul.f32 %v1717, %v2244
    %v2246 = vrcp.pop %v2107
    %v2247 = vmul.f32 %v1719, %v2246
    %v2248 = vrcp.pop %v2111
    %v2249 = vmul.f32 %v1721, %v2248
    %v2250 = vrcp.pop %v2115
    %v2251 = vmul.f32 %v1723, %v2250
    %v2252 = vrcp.pop %v2119
    %v2253 = vmul.f32 %v1725, %v2252
    %v2254 = vrcp.pop %v2123
    %v2255 = vmul.f32 %v1727, %v2254
    %v2256 = vrcp.pop %v2127
    %v2257 = vmul.f32 %v1729, %v2256
    %v2258 = vrcp.pop %v2131
    %v2259 = vmul.f32 %v1731, %v2258
    %v2260 = vrcp.pop %v2135
    %v2261 = vmul.f32 %v1733, %v2260
    %v2262 = vrcp.pop %v2139
    %v2263 = vmul.f32 %v1735, %v2262
    %v2264 = vrcp.pop %v2143
    %v2265 = vmul.f32 %v1737, %v2264
    %v2266 = vrcp.pop %v2147
    %v2267 = vmul.f32 %v1739, %v2266
    %v2268 = vrcp.pop %v2151
    %v2269 = vmul.f32 %v1741, %v2268
    %v2270 = vrcp.pop %v2155
    %v2271 = vmul.f32 %v1743, %v2270
    %v2272 = vrcp.pop %v2159
    %v2273 = vmul.f32 %v1745, %v2272
    %v2274 = vrcp.pop %v2163
    %v2275 = vmul.f32 %v1747, %v2274
    %v2276 = vrcp.pop %v2167
    %v2277 = vmul.f32 %v1749, %v2276
    %v2278 = vrcp.pop %v2171
    %v2279 = vmul.f32 %v1751, %v2278
    %v2280 = vrcp.pop %v2175
    %v2281 = vmul.f32 %v1753, %v2280
    %v2282 = vrcp.pop %v2179
    %v2283 = vmul.f32 %v1755, %v2282
    %v2284 = vrcp.pop %v2183
    %v2285 = vmul.f32 %v1757, %v2284
    %v2286 = vrcp.pop %v2187
    %v2287 = vmul.f32 %v1759, %v2286
    %v2288 = vrcp.pop %v2191
    %v2289 = vmul.f32 %v1761, %v2288
    %v2290 = vrcp.pop %v2195
    %v2291 = vmul.f32 %v1763, %v2290
    %2293 = vset.pattern.permute.xlu0 0
    %2294 = vperm.xlu0 %2293, %v2229
    %v2295 = vpop.permute.xlu0 %2294
    %2298 = vset.pattern.permute.xlu0 0
    %2299 = vperm.xlu0 %2298, %v2231
    %v2300 = vpop.permute.xlu0 %2299
    %2303 = vset.pattern.permute.xlu0 0
    %2304 = vperm.xlu0 %2303, %v2233
    %v2305 = vpop.permute.xlu0 %2304
    %2308 = vset.pattern.permute.xlu0 0
    %2309 = vperm.xlu0 %2308, %v2235
    %v2310 = vpop.permute.xlu0 %2309
    %2313 = vset.pattern.permute.xlu0 0
    %2314 = vperm.xlu0 %2313, %v2237
    %v2315 = vpop.permute.xlu0 %2314
    %2318 = vset.pattern.permute.xlu0 0
    %2319 = vperm.xlu0 %2318, %v2239
    %v2320 = vpop.permute.xlu0 %2319
    %2323 = vset.pattern.permute.xlu0 0
    %2324 = vperm.xlu0 %2323, %v2241
    %v2325 = vpop.permute.xlu0 %2324
    %2328 = vset.pattern.permute.xlu0 0
    %2329 = vperm.xlu0 %2328, %v2243
    %v2330 = vpop.permute.xlu0 %2329
    %2333 = vset.pattern.permute.xlu0 0
    %2334 = vperm.xlu0 %2333, %v2245
    %v2335 = vpop.permute.xlu0 %2334
    %2338 = vset.pattern.permute.xlu0 0
    %2339 = vperm.xlu0 %2338, %v2247
    %v2340 = vpop.permute.xlu0 %2339
    %2343 = vset.pattern.permute.xlu0 0
    %2344 = vperm.xlu0 %2343, %v2249
    %v2345 = vpop.permute.xlu0 %2344
    %2348 = vset.pattern.permute.xlu0 0
    %2349 = vperm.xlu0 %2348, %v2251
    %v2350 = vpop.permute.xlu0 %2349
    %2353 = vset.pattern.permute.xlu0 0
    %2354 = vperm.xlu0 %2353, %v2253
    %v2355 = vpop.permute.xlu0 %2354
    %2358 = vset.pattern.permute.xlu0 0
    %2359 = vperm.xlu0 %2358, %v2255
    %v2360 = vpop.permute.xlu0 %2359
    %2363 = vset.pattern.permute.xlu0 0
    %2364 = vperm.xlu0 %2363, %v2257
    %v2365 = vpop.permute.xlu0 %2364
    %2368 = vset.pattern.permute.xlu0 0
    %2369 = vperm.xlu0 %2368, %v2259
    %v2370 = vpop.permute.xlu0 %2369
    %2373 = vset.pattern.permute.xlu0 0
    %2374 = vperm.xlu0 %2373, %v2261
    %v2375 = vpop.permute.xlu0 %2374
    %2378 = vset.pattern.permute.xlu0 0
    %2379 = vperm.xlu0 %2378, %v2263
    %v2380 = vpop.permute.xlu0 %2379
    %2383 = vset.pattern.permute.xlu0 0
    %2384 = vperm.xlu0 %2383, %v2265
    %v2385 = vpop.permute.xlu0 %2384
    %2388 = vset.pattern.permute.xlu0 0
    %2389 = vperm.xlu0 %2388, %v2267
    %v2390 = vpop.permute.xlu0 %2389
    %2393 = vset.pattern.permute.xlu0 0
    %2394 = vperm.xlu0 %2393, %v2269
    %v2395 = vpop.permute.xlu0 %2394
    %2398 = vset.pattern.permute.xlu0 0
    %2399 = vperm.xlu0 %2398, %v2271
    %v2400 = vpop.permute.xlu0 %2399
    %2403 = vset.pattern.permute.xlu0 0
    %2404 = vperm.xlu0 %2403, %v2273
    %v2405 = vpop.permute.xlu0 %2404
    %2408 = vset.pattern.permute.xlu0 0
    %2409 = vperm.xlu0 %2408, %v2275
    %v2410 = vpop.permute.xlu0 %2409
    %2413 = vset.pattern.permute.xlu0 0
    %2414 = vperm.xlu0 %2413, %v2277
    %v2415 = vpop.permute.xlu0 %2414
    %2418 = vset.pattern.permute.xlu0 0
    %2419 = vperm.xlu0 %2418, %v2279
    %v2420 = vpop.permute.xlu0 %2419
    %2423 = vset.pattern.permute.xlu0 0
    %2424 = vperm.xlu0 %2423, %v2281
    %v2425 = vpop.permute.xlu0 %2424
    %2428 = vset.pattern.permute.xlu0 0
    %2429 = vperm.xlu0 %2428, %v2283
    %v2430 = vpop.permute.xlu0 %2429
    %2433 = vset.pattern.permute.xlu0 0
    %2434 = vperm.xlu0 %2433, %v2285
    %v2435 = vpop.permute.xlu0 %2434
    %2438 = vset.pattern.permute.xlu0 0
    %2439 = vperm.xlu0 %2438, %v2287
    %v2440 = vpop.permute.xlu0 %2439
    %2443 = vset.pattern.permute.xlu0 0
    %2444 = vperm.xlu0 %2443, %v2289
    %v2445 = vpop.permute.xlu0 %2444
    %2448 = vset.pattern.permute.xlu0 0
    %2449 = vperm.xlu0 %2448, %v2291
    %v2450 = vpop.permute.xlu0 %2449
    %v2452 = vmul.f32 %v70, %v2295
    %v2453 = vmul.f32 %v71, %v2300
    %v2454 = vmul.f32 %v72, %v2305
    %v2455 = vmul.f32 %v73, %v2310
    %v2456 = vmul.f32 %v74, %v2315
    %v2457 = vmul.f32 %v75, %v2320
    %v2458 = vmul.f32 %v76, %v2325
    %v2459 = vmul.f32 %v77, %v2330
    %v2460 = vmul.f32 %v78, %v2335
    %v2461 = vmul.f32 %v79, %v2340
    %v2462 = vmul.f32 %v80, %v2345
    %v2463 = vmul.f32 %v81, %v2350
    %v2464 = vmul.f32 %v82, %v2355
    %v2465 = vmul.f32 %v83, %v2360
    %v2466 = vmul.f32 %v84, %v2365
    %v2467 = vmul.f32 %v85, %v2370
    %v2468 = vmul.f32 %v86, %v2375
    %v2469 = vmul.f32 %v87, %v2380
    %v2470 = vmul.f32 %v88, %v2385
    %v2471 = vmul.f32 %v89, %v2390
    %v2472 = vmul.f32 %v90, %v2395
    %v2473 = vmul.f32 %v91, %v2400
    %v2474 = vmul.f32 %v92, %v2405
    %v2475 = vmul.f32 %v93, %v2410
    %v2476 = vmul.f32 %v94, %v2415
    %v2477 = vmul.f32 %v95, %v2420
    %v2478 = vmul.f32 %v96, %v2425
    %v2479 = vmul.f32 %v97, %v2430
    %v2480 = vmul.f32 %v98, %v2435
    %v2481 = vmul.f32 %v99, %v2440
    %v2482 = vmul.f32 %v100, %v2445
    %v2483 = vmul.f32 %v101, %v2450
    %v2484 = vrot.slane %v2452, 4
    %v2485 = vadd.f32 %v2452, %v2484
    %v2486 = vrot.slane %v2485, 2
    %v2487 = vadd.f32 %v2485, %v2486
    %v2488 = vrot.slane %v2487, 1
    %v2489 = vadd.f32 %v2487, %v2488
    %v2490 = vrot.slane %v2453, 4
    %v2491 = vadd.f32 %v2453, %v2490
    %v2492 = vrot.slane %v2491, 2
    %v2493 = vadd.f32 %v2491, %v2492
    %v2494 = vrot.slane %v2493, 1
    %v2495 = vadd.f32 %v2493, %v2494
    %v2496 = vrot.slane %v2454, 4
    %v2497 = vadd.f32 %v2454, %v2496
    %v2498 = vrot.slane %v2497, 2
    %v2499 = vadd.f32 %v2497, %v2498
    %v2500 = vrot.slane %v2499, 1
    %v2501 = vadd.f32 %v2499, %v2500
    %v2502 = vrot.slane %v2455, 4
    %v2503 = vadd.f32 %v2455, %v2502
    %v2504 = vrot.slane %v2503, 2
    %v2505 = vadd.f32 %v2503, %v2504
    %v2506 = vrot.slane %v2505, 1
    %v2507 = vadd.f32 %v2505, %v2506
    %v2508 = vrot.slane %v2456, 4
    %v2509 = vadd.f32 %v2456, %v2508
    %v2510 = vrot.slane %v2509, 2
    %v2511 = vadd.f32 %v2509, %v2510
    %v2512 = vrot.slane %v2511, 1
    %v2513 = vadd.f32 %v2511, %v2512
    %v2514 = vrot.slane %v2457, 4
    %v2515 = vadd.f32 %v2457, %v2514
    %v2516 = vrot.slane %v2515, 2
    %v2517 = vadd.f32 %v2515, %v2516
    %v2518 = vrot.slane %v2517, 1
    %v2519 = vadd.f32 %v2517, %v2518
    %v2520 = vrot.slane %v2458, 4
    %v2521 = vadd.f32 %v2458, %v2520
    %v2522 = vrot.slane %v2521, 2
    %v2523 = vadd.f32 %v2521, %v2522
    %v2524 = vrot.slane %v2523, 1
    %v2525 = vadd.f32 %v2523, %v2524
    %v2526 = vrot.slane %v2459, 4
    %v2527 = vadd.f32 %v2459, %v2526
    %v2528 = vrot.slane %v2527, 2
    %v2529 = vadd.f32 %v2527, %v2528
    %v2530 = vrot.slane %v2529, 1
    %v2531 = vadd.f32 %v2529, %v2530
    %v2532 = vrot.slane %v2460, 4
    %v2533 = vadd.f32 %v2460, %v2532
    %v2534 = vrot.slane %v2533, 2
    %v2535 = vadd.f32 %v2533, %v2534
    %v2536 = vrot.slane %v2535, 1
    %v2537 = vadd.f32 %v2535, %v2536
    %v2538 = vrot.slane %v2461, 4
    %v2539 = vadd.f32 %v2461, %v2538
    %v2540 = vrot.slane %v2539, 2
    %v2541 = vadd.f32 %v2539, %v2540
    %v2542 = vrot.slane %v2541, 1
    %v2543 = vadd.f32 %v2541, %v2542
    %v2544 = vrot.slane %v2462, 4
    %v2545 = vadd.f32 %v2462, %v2544
    %v2546 = vrot.slane %v2545, 2
    %v2547 = vadd.f32 %v2545, %v2546
    %v2548 = vrot.slane %v2547, 1
    %v2549 = vadd.f32 %v2547, %v2548
    %v2550 = vrot.slane %v2463, 4
    %v2551 = vadd.f32 %v2463, %v2550
    %v2552 = vrot.slane %v2551, 2
    %v2553 = vadd.f32 %v2551, %v2552
    %v2554 = vrot.slane %v2553, 1
    %v2555 = vadd.f32 %v2553, %v2554
    %v2556 = vrot.slane %v2464, 4
    %v2557 = vadd.f32 %v2464, %v2556
    %v2558 = vrot.slane %v2557, 2
    %v2559 = vadd.f32 %v2557, %v2558
    %v2560 = vrot.slane %v2559, 1
    %v2561 = vadd.f32 %v2559, %v2560
    %v2562 = vrot.slane %v2465, 4
    %v2563 = vadd.f32 %v2465, %v2562
    %v2564 = vrot.slane %v2563, 2
    %v2565 = vadd.f32 %v2563, %v2564
    %v2566 = vrot.slane %v2565, 1
    %v2567 = vadd.f32 %v2565, %v2566
    %v2568 = vrot.slane %v2466, 4
    %v2569 = vadd.f32 %v2466, %v2568
    %v2570 = vrot.slane %v2569, 2
    %v2571 = vadd.f32 %v2569, %v2570
    %v2572 = vrot.slane %v2571, 1
    %v2573 = vadd.f32 %v2571, %v2572
    %v2574 = vrot.slane %v2467, 4
    %v2575 = vadd.f32 %v2467, %v2574
    %v2576 = vrot.slane %v2575, 2
    %v2577 = vadd.f32 %v2575, %v2576
    %v2578 = vrot.slane %v2577, 1
    %v2579 = vadd.f32 %v2577, %v2578
    %v2580 = vrot.slane %v2468, 4
    %v2581 = vadd.f32 %v2468, %v2580
    %v2582 = vrot.slane %v2581, 2
    %v2583 = vadd.f32 %v2581, %v2582
    %v2584 = vrot.slane %v2583, 1
    %v2585 = vadd.f32 %v2583, %v2584
    %v2586 = vrot.slane %v2469, 4
    %v2587 = vadd.f32 %v2469, %v2586
    %v2588 = vrot.slane %v2587, 2
    %v2589 = vadd.f32 %v2587, %v2588
    %v2590 = vrot.slane %v2589, 1
    %v2591 = vadd.f32 %v2589, %v2590
    %v2592 = vrot.slane %v2470, 4
    %v2593 = vadd.f32 %v2470, %v2592
    %v2594 = vrot.slane %v2593, 2
    %v2595 = vadd.f32 %v2593, %v2594
    %v2596 = vrot.slane %v2595, 1
    %v2597 = vadd.f32 %v2595, %v2596
    %v2598 = vrot.slane %v2471, 4
    %v2599 = vadd.f32 %v2471, %v2598
    %v2600 = vrot.slane %v2599, 2
    %v2601 = vadd.f32 %v2599, %v2600
    %v2602 = vrot.slane %v2601, 1
    %v2603 = vadd.f32 %v2601, %v2602
    %v2604 = vrot.slane %v2472, 4
    %v2605 = vadd.f32 %v2472, %v2604
    %v2606 = vrot.slane %v2605, 2
    %v2607 = vadd.f32 %v2605, %v2606
    %v2608 = vrot.slane %v2607, 1
    %v2609 = vadd.f32 %v2607, %v2608
    %v2610 = vrot.slane %v2473, 4
    %v2611 = vadd.f32 %v2473, %v2610
    %v2612 = vrot.slane %v2611, 2
    %v2613 = vadd.f32 %v2611, %v2612
    %v2614 = vrot.slane %v2613, 1
    %v2615 = vadd.f32 %v2613, %v2614
    %v2616 = vrot.slane %v2474, 4
    %v2617 = vadd.f32 %v2474, %v2616
    %v2618 = vrot.slane %v2617, 2
    %v2619 = vadd.f32 %v2617, %v2618
    %v2620 = vrot.slane %v2619, 1
    %v2621 = vadd.f32 %v2619, %v2620
    %v2622 = vrot.slane %v2475, 4
    %v2623 = vadd.f32 %v2475, %v2622
    %v2624 = vrot.slane %v2623, 2
    %v2625 = vadd.f32 %v2623, %v2624
    %v2626 = vrot.slane %v2625, 1
    %v2627 = vadd.f32 %v2625, %v2626
    %v2628 = vrot.slane %v2476, 4
    %v2629 = vadd.f32 %v2476, %v2628
    %v2630 = vrot.slane %v2629, 2
    %v2631 = vadd.f32 %v2629, %v2630
    %v2632 = vrot.slane %v2631, 1
    %v2633 = vadd.f32 %v2631, %v2632
    %v2634 = vrot.slane %v2477, 4
    %v2635 = vadd.f32 %v2477, %v2634
    %v2636 = vrot.slane %v2635, 2
    %v2637 = vadd.f32 %v2635, %v2636
    %v2638 = vrot.slane %v2637, 1
    %v2639 = vadd.f32 %v2637, %v2638
    %v2640 = vrot.slane %v2478, 4
    %v2641 = vadd.f32 %v2478, %v2640
    %v2642 = vrot.slane %v2641, 2
    %v2643 = vadd.f32 %v2641, %v2642
    %v2644 = vrot.slane %v2643, 1
    %v2645 = vadd.f32 %v2643, %v2644
    %v2646 = vrot.slane %v2479, 4
    %v2647 = vadd.f32 %v2479, %v2646
    %v2648 = vrot.slane %v2647, 2
    %v2649 = vadd.f32 %v2647, %v2648
    %v2650 = vrot.slane %v2649, 1
    %v2651 = vadd.f32 %v2649, %v2650
    %v2652 = vrot.slane %v2480, 4
    %v2653 = vadd.f32 %v2480, %v2652
    %v2654 = vrot.slane %v2653, 2
    %v2655 = vadd.f32 %v2653, %v2654
    %v2656 = vrot.slane %v2655, 1
    %v2657 = vadd.f32 %v2655, %v2656
    %v2658 = vrot.slane %v2481, 4
    %v2659 = vadd.f32 %v2481, %v2658
    %v2660 = vrot.slane %v2659, 2
    %v2661 = vadd.f32 %v2659, %v2660
    %v2662 = vrot.slane %v2661, 1
    %v2663 = vadd.f32 %v2661, %v2662
    %v2664 = vrot.slane %v2482, 4
    %v2665 = vadd.f32 %v2482, %v2664
    %v2666 = vrot.slane %v2665, 2
    %v2667 = vadd.f32 %v2665, %v2666
    %v2668 = vrot.slane %v2667, 1
    %v2669 = vadd.f32 %v2667, %v2668
    %v2670 = vrot.slane %v2483, 4
    %v2671 = vadd.f32 %v2483, %v2670
    %v2672 = vrot.slane %v2671, 2
    %v2673 = vadd.f32 %v2671, %v2672
    %v2674 = vrot.slane %v2673, 1
    %v2675 = vadd.f32 %v2673, %v2674
    %v2708 = vsel %vm1452, %v2495, %v2489
    %v2709 = vsel %vm1454, %v2501, %v2708
    %v2710 = vsel %vm1456, %v2507, %v2709
    %v2711 = vsel %vm1458, %v2513, %v2710
    %v2712 = vsel %vm1460, %v2519, %v2711
    %v2713 = vsel %vm1462, %v2525, %v2712
    %v2714 = vsel %vm1464, %v2531, %v2713
    %v2715 = vsel %vm1452, %v2543, %v2537
    %v2716 = vsel %vm1454, %v2549, %v2715
    %v2717 = vsel %vm1456, %v2555, %v2716
    %v2718 = vsel %vm1458, %v2561, %v2717
    %v2719 = vsel %vm1460, %v2567, %v2718
    %v2720 = vsel %vm1462, %v2573, %v2719
    %v2721 = vsel %vm1464, %v2579, %v2720
    %v2722 = vsel %vm1452, %v2591, %v2585
    %v2723 = vsel %vm1454, %v2597, %v2722
    %v2724 = vsel %vm1456, %v2603, %v2723
    %v2725 = vsel %vm1458, %v2609, %v2724
    %v2726 = vsel %vm1460, %v2615, %v2725
    %v2727 = vsel %vm1462, %v2621, %v2726
    %v2728 = vsel %vm1464, %v2627, %v2727
    %v2729 = vsel %vm1452, %v2639, %v2633
    %v2730 = vsel %vm1454, %v2645, %v2729
    %v2731 = vsel %vm1456, %v2651, %v2730
    %v2732 = vsel %vm1458, %v2657, %v2731
    %v2733 = vsel %vm1460, %v2663, %v2732
    %v2734 = vsel %vm1462, %v2669, %v2733
    %v2735 = vsel %vm1464, %v2675, %v2734
    %2740 = vst [vmem:[#allocation8] sm:$0xff] %v2714
    %2741 = vst [vmem:[#allocation8 + $0x8] sm:$0xff] %v2721
    %2742 = vst [vmem:[#allocation8 + $0x10] sm:$0xff] %v2728
    %2743 = vst [vmem:[#allocation8 + $0x18] sm:$0xff] %v2735
    %v2744 = vlaneseq
    %v2745 = vshrl.u32 %v2744, 7
    %v2746 = vsub.s32 %v1323, %v2745
    %v2747 = vrot.slane %v2295, %v2746
    %v2748 = vlaneseq
    %v2749 = vshrl.u32 %v2748, 7
    %v2750 = vsub.s32 %v1323, %v2749
    %v2751 = vrot.slane %v2300, %v2750
    %v2752 = vlaneseq
    %v2753 = vshrl.u32 %v2752, 7
    %v2754 = vsub.s32 %v1323, %v2753
    %v2755 = vrot.slane %v2305, %v2754
    %v2756 = vlaneseq
    %v2757 = vshrl.u32 %v2756, 7
    %v2758 = vsub.s32 %v1323, %v2757
    %v2759 = vrot.slane %v2310, %v2758
    %v2760 = vlaneseq
    %v2761 = vshrl.u32 %v2760, 7
    %v2762 = vsub.s32 %v1323, %v2761
    %v2763 = vrot.slane %v2315, %v2762
    %v2764 = vlaneseq
    %v2765 = vshrl.u32 %v2764, 7
    %v2766 = vsub.s32 %v1323, %v2765
    %v2767 = vrot.slane %v2320, %v2766
    %v2768 = vlaneseq
    %v2769 = vshrl.u32 %v2768, 7
    %v2770 = vsub.s32 %v1323, %v2769
    %v2771 = vrot.slane %v2325, %v2770
    %v2772 = vlaneseq
    %v2773 = vshrl.u32 %v2772, 7
    %v2774 = vsub.s32 %v1323, %v2773
    %v2775 = vrot.slane %v2330, %v2774
    %v2776 = vlaneseq
    %v2777 = vshrl.u32 %v2776, 7
    %v2778 = vsub.s32 %v1323, %v2777
    %v2779 = vrot.slane %v2335, %v2778
    %v2780 = vlaneseq
    %v2781 = vshrl.u32 %v2780, 7
    %v2782 = vsub.s32 %v1323, %v2781
    %v2783 = vrot.slane %v2340, %v2782
    %v2784 = vlaneseq
    %v2785 = vshrl.u32 %v2784, 7
    %v2786 = vsub.s32 %v1323, %v2785
    %v2787 = vrot.slane %v2345, %v2786
    %v2788 = vlaneseq
    %v2789 = vshrl.u32 %v2788, 7
    %v2790 = vsub.s32 %v1323, %v2789
    %v2791 = vrot.slane %v2350, %v2790
    %v2792 = vlaneseq
    %v2793 = vshrl.u32 %v2792, 7
    %v2794 = vsub.s32 %v1323, %v2793
    %v2795 = vrot.slane %v2355, %v2794
    %v2796 = vlaneseq
    %v2797 = vshrl.u32 %v2796, 7
    %v2798 = vsub.s32 %v1323, %v2797
    %v2799 = vrot.slane %v2360, %v2798
    %v2800 = vlaneseq
    %v2801 = vshrl.u32 %v2800, 7
    %v2802 = vsub.s32 %v1323, %v2801
    %v2803 = vrot.slane %v2365, %v2802
    %v2804 = vlaneseq
    %v2805 = vshrl.u32 %v2804, 7
    %v2806 = vsub.s32 %v1323, %v2805
    %v2807 = vrot.slane %v2370, %v2806
    %v2808 = vlaneseq
    %v2809 = vshrl.u32 %v2808, 7
    %v2810 = vsub.s32 %v1323, %v2809
    %v2811 = vrot.slane %v2375, %v2810
    %v2812 = vlaneseq
    %v2813 = vshrl.u32 %v2812, 7
    %v2814 = vsub.s32 %v1323, %v2813
    %v2815 = vrot.slane %v2380, %v2814
    %v2816 = vlaneseq
    %v2817 = vshrl.u32 %v2816, 7
    %v2818 = vsub.s32 %v1323, %v2817
    %v2819 = vrot.slane %v2385, %v2818
    %v2820 = vlaneseq
    %v2821 = vshrl.u32 %v2820, 7
    %v2822 = vsub.s32 %v1323, %v2821
    %v2823 = vrot.slane %v2390, %v2822
    %v2824 = vlaneseq
    %v2825 = vshrl.u32 %v2824, 7
    %v2826 = vsub.s32 %v1323, %v2825
    %v2827 = vrot.slane %v2395, %v2826
    %v2828 = vlaneseq
    %v2829 = vshrl.u32 %v2828, 7
    %v2830 = vsub.s32 %v1323, %v2829
    %v2831 = vrot.slane %v2400, %v2830
    %v2832 = vlaneseq
    %v2833 = vshrl.u32 %v2832, 7
    %v2834 = vsub.s32 %v1323, %v2833
    %v2835 = vrot.slane %v2405, %v2834
    %v2836 = vlaneseq
    %v2837 = vshrl.u32 %v2836, 7
    %v2838 = vsub.s32 %v1323, %v2837
    %v2839 = vrot.slane %v2410, %v2838
    %v2840 = vlaneseq
    %v2841 = vshrl.u32 %v2840, 7
    %v2842 = vsub.s32 %v1323, %v2841
    %v2843 = vrot.slane %v2415, %v2842
    %v2844 = vlaneseq
    %v2845 = vshrl.u32 %v2844, 7
    %v2846 = vsub.s32 %v1323, %v2845
    %v2847 = vrot.slane %v2420, %v2846
    %v2848 = vlaneseq
    %v2849 = vshrl.u32 %v2848, 7
    %v2850 = vsub.s32 %v1323, %v2849
    %v2851 = vrot.slane %v2425, %v2850
    %v2852 = vlaneseq
    %v2853 = vshrl.u32 %v2852, 7
    %v2854 = vsub.s32 %v1323, %v2853
    %v2855 = vrot.slane %v2430, %v2854
    %v2856 = vlaneseq
    %v2857 = vshrl.u32 %v2856, 7
    %v2858 = vsub.s32 %v1323, %v2857
    %v2859 = vrot.slane %v2435, %v2858
    %v2860 = vlaneseq
    %v2861 = vshrl.u32 %v2860, 7
    %v2862 = vsub.s32 %v1323, %v2861
    %v2863 = vrot.slane %v2440, %v2862
    %v2864 = vlaneseq
    %v2865 = vshrl.u32 %v2864, 7
    %v2866 = vsub.s32 %v1323, %v2865
    %v2867 = vrot.slane %v2445, %v2866
    %v2868 = vlaneseq
    %v2869 = vshrl.u32 %v2868, 7
    %v2870 = vsub.s32 %v1323, %v2869
    %v2871 = vrot.slane %v2450, %v2870
    %v2872 = vsel %vm1452, %v2751, %v2747
    %v2873 = vsel %vm1454, %v2755, %v2872
    %v2874 = vsel %vm1456, %v2759, %v2873
    %v2875 = vsel %vm1458, %v2763, %v2874
    %v2876 = vsel %vm1460, %v2767, %v2875
    %v2877 = vsel %vm1462, %v2771, %v2876
    %v2878 = vsel %vm1464, %v2775, %v2877
    %v2879 = vsel %vm1452, %v2783, %v2779
    %v2880 = vsel %vm1454, %v2787, %v2879
    %v2881 = vsel %vm1456, %v2791, %v2880
    %v2882 = vsel %vm1458, %v2795, %v2881
    %v2883 = vsel %vm1460, %v2799, %v2882
    %v2884 = vsel %vm1462, %v2803, %v2883
    %v2885 = vsel %vm1464, %v2807, %v2884
    %v2886 = vsel %vm1452, %v2815, %v2811
    %v2887 = vsel %vm1454, %v2819, %v2886
    %v2888 = vsel %vm1456, %v2823, %v2887
    %v2889 = vsel %vm1458, %v2827, %v2888
    %v2890 = vsel %vm1460, %v2831, %v2889
    %v2891 = vsel %vm1462, %v2835, %v2890
    %v2892 = vsel %vm1464, %v2839, %v2891
    %v2893 = vsel %vm1452, %v2847, %v2843
    %v2894 = vsel %vm1454, %v2851, %v2893
    %v2895 = vsel %vm1456, %v2855, %v2894
    %v2896 = vsel %vm1458, %v2859, %v2895
    %v2897 = vsel %vm1460, %v2863, %v2896
    %v2898 = vsel %vm1462, %v2867, %v2897
    %v2899 = vsel %vm1464, %v2871, %v2898
    %2904 = vst.msk [vmem:[%s8] sm:$0xff] %vm1491, %v2878
    %2905 = vst.msk [vmem:[%s8 + $0x8] sm:$0xff] %vm1491, %v2885
    %2906 = vst.msk [vmem:[%s8 + $0x10] sm:$0xff] %vm1491, %v2892
    %2907 = vst.msk [vmem:[%s8 + $0x18] sm:$0xff] %vm1491, %v2899
    // Predicated region
    $region42: #{tpu_custom_call.1} parent=1 // pred_check
      _
    $region43: #{tpu_custom_call.1} parent=1 // pred_check_branch
      %2909 = sbr.rel (0) target = $region45
    $region44: #{tpu_custom_call.1} parent=1 // pred_region
      %s2911 = ssub.s32 512, 512
      %2912 = vsyncadd [#allocation4], %s2911
      %s2913 = sshll.u32 [#allocation8], 4
      %s2914 = int_to_ptr.vmem [resolvable:$true] %s2913
      %2919 = dma.vmem_to_hbm [thread:$0]  %s2914, 512, %s7, [#allocation4], 128, 128, 8
    $region45: #{tpu_custom_call.1} parent=1 // pred_fallthru
      _
    // Predicated region
    $region46: #{tpu_custom_call.1} parent=1 // pred_check
      _
    $region47: #{tpu_custom_call.1} parent=1 // pred_check_branch
      %2921 = sbr.rel (0) target = $region49
    $region48: #{tpu_custom_call.1} parent=1 // pred_region
      _
    $region49: #{tpu_custom_call.1} parent=1 // pred_fallthru
      _
    // Predicated region
    $region50: #{tpu_custom_call.1} parent=1 // pred_check
      _
    $region51: #{tpu_custom_call.1} parent=1 // pred_check_branch
      %2923 = sbr.rel (0) target = $region53
    $region52: #{tpu_custom_call.1} parent=1 // pred_region
      %2924 = dma.done [#allocation4], 512
    $region53: #{tpu_custom_call.1} parent=1 // pred_fallthru
      _
    // Predicated region
    $region54: #{tpu_custom_call.1} parent=1 // pred_check
      _
    $region55: #{tpu_custom_call.1} parent=1 // pred_check_branch
      %2926 = sbr.rel (0) target = $region57
    $region56: #{tpu_custom_call.1} parent=1 // pred_region
      _
    $region57: #{tpu_custom_call.1} parent=1 // pred_fallthru
      _
    %2927 = vsyncpa [#allocation3], 1
    %2928 = vsyncpa [#allocation6], 1
    %2929 = vsyncpa [#allocation4], 1

</llo_original>
